<compile_context>
chip_gen: v7x
topology: tpu7x:2x2x1
jax: 0.10.0
libtpu: 0.0.40
codegen_flags: <defaults>
</compile_context>

<pallas_src>
import jax
import jax.numpy as jnp
from jax.experimental import pallas as pl
from jax.experimental.pallas import tpu as pltpu

EPS = 1e-5  # nn.BatchNorm1d default eps


def _bn_relu(y, gamma, beta, inv_n):
    """Train-mode BatchNorm1d + ReLU on channel-major y: (C, N), stats over tokens."""
    s = jnp.sum(y, axis=1, keepdims=True)            # (C, 1)
    ss = jnp.sum(y * y, axis=1, keepdims=True)       # (C, 1) -- one pass for both sums
    mean = s * inv_n
    var = ss * inv_n - mean * mean                   # biased variance (matches PyTorch BN)
    scale = gamma * jax.lax.rsqrt(var + EPS)         # (C, 1)
    shift = beta - mean * scale                      # (C, 1)
    return jnp.maximum(y * scale + shift, 0.0)       # single fused normalize+affine+ReLU


def _make_kernel(B, L):
    inv_n = 1.0 / float(B * L)

    def kernel(x_ref, w1_ref, g1_ref, b1_ref,
               w2_ref, g2_ref, b2_ref,
               w3_ref, g3_ref, b3_ref,
               o_ref):
        x = x_ref[...]                                # (1, N), N = B*L tokens on lanes
        # layer 1: Cin == 1, so the 1x1 conv is a broadcast multiply on the VPU (no MXU,
        # no zero-padded contraction).
        y1 = w1_ref[...] * x                          # (64,1)*(1,N) -> (64, N)
        h1 = _bn_relu(y1, g1_ref[...], b1_ref[...], inv_n)
        # layers 2/3: channel-major matmuls on the MXU, f32 accumulate.
        y2 = jnp.dot(w2_ref[...], h1, preferred_element_type=jnp.float32)   # (128, N)
        h2 = _bn_relu(y2, g2_ref[...], b2_ref[...], inv_n)
        y3 = jnp.dot(w3_ref[...], h2, preferred_element_type=jnp.float32)   # (256, N)
        h3 = _bn_relu(y3, g3_ref[...], b3_ref[...], inv_n)
        # Fused output "transpose": h3[:, b*L:(b+1)*L] is exactly out[b] of the
        # channel-major (B, 256, L) tensor that PyTorch's out.view(B, -1) flattens.
        for b in range(B):                            # static unroll; B is small
            o_ref[b] = h3[:, b * L:(b + 1) * L]

    return kernel


def resnet50fc_forward(x_ncl, params):
    """x_ncl: (B, 1, L) float32; params: dict of conv weights / BN affine params."""
    B, Cin, L = x_ncl.shape
    assert Cin == 1
    N = B * L

    # glue (all cheap / layout-only): tokens on the lane axis, order n = b*L + l
    x_t = x_ncl.reshape(1, N).astype(jnp.float32)

    w1 = params["w1"].reshape(64, 1)        # (Cout, Cin) used directly as matmul LHS
    w2 = params["w2"].reshape(128, 64)
    w3 = params["w3"].reshape(256, 128)
    g1, b1 = params["g1"].reshape(64, 1), params["b1"].reshape(64, 1)
    g2, b2 = params["g2"].reshape(128, 1), params["b2"].reshape(128, 1)
    g3, b3 = params["g3"].reshape(256, 1), params["b3"].reshape(256, 1)

    vmem = pl.BlockSpec(memory_space=pltpu.MemorySpace.VMEM)
    # ~3-4 KB live f32 per token + slack; keep within the smallest-generation budget (v7x).
    vmem_limit = int(min(max(4 * N * 1024 + (4 << 20), 32 << 20), 48 << 20))

    out = pl.pallas_call(
        _make_kernel(B, L),
        out_shape=jax.ShapeDtypeStruct((B, 256, L), jnp.float32),
        in_specs=[vmem] * 10,
        out_specs=vmem,
        compiler_params=pltpu.CompilerParams(vmem_limit_bytes=vmem_limit),
    )(x_t, w1, g1, b1, w2, g2, b2, w3, g3, b3)

    # Output is already channel-major (B, 256, L): this reshape is a free row-major view
    # and matches PyTorch's out.view(B, -1).  No XLA transpose pass needed.
    return out.reshape(B, 256 * L)


def resnet50fc_reference(x_ncl, params):
    """Pure-JAX reference mirroring the PyTorch forward (train-mode BN)."""
    def bn_relu(y, g, b):  # y: (B, C, L)
        mean = jnp.mean(y, axis=(0, 2), keepdims=True)
        var = jnp.mean((y - mean) ** 2, axis=(0, 2), keepdims=True)
        yh = (y - mean) / jnp.sqrt(var + EPS)
        return jnp.maximum(yh * g[None, :, None] + b[None, :, None], 0.0)

    h = jnp.einsum("oc,bcl->bol", params["w1"].reshape(64, 1), x_ncl)
    h = bn_relu(h, params["g1"], params["b1"])
    h = jnp.einsum("oc,bcl->bol", params["w2"].reshape(128, 64), h)
    h = bn_relu(h, params["g2"], params["b2"])
    h = jnp.einsum("oc,bcl->bol", params["w3"].reshape(256, 128), h)
    h = bn_relu(h, params["g3"], params["b3"])
    return h.reshape(h.shape[0], -1)


def init_params(key):
    ks = jax.random.split(key, 9)
    return {
        "w1": jax.random.normal(ks[0], (64, 1, 1), jnp.float32) * 0.1,
        "w2": jax.random.normal(ks[1], (128, 64, 1), jnp.float32) * 0.1,
        "w3": jax.random.normal(ks[2], (256, 128, 1), jnp.float32) * 0.1,
        "g1": 1.0 + 0.1 * jax.random.normal(ks[3], (64,), jnp.float32),
        "b1": 0.1 * jax.random.normal(ks[4], (64,), jnp.float32),
        "g2": 1.0 + 0.1 * jax.random.normal(ks[5], (128,), jnp.float32),
        "b2": 0.1 * jax.random.normal(ks[6], (128,), jnp.float32),
        "g3": 1.0 + 0.1 * jax.random.normal(ks[7], (256,), jnp.float32),
        "b3": 0.1 * jax.random.normal(ks[8], (256,), jnp.float32),
    }


if __name__ == "__main__":
    key = jax.random.PRNGKey(0)
    k_x, k_p = jax.random.split(key)

    B, L = 2, 16
    x = jax.random.normal(k_x, (B, 1, L), jnp.float32)   # PyTorch Conv1d input (B, C=1, L)
    params = init_params(k_p)

    out = jax.block_until_ready(resnet50fc_forward(x, params))
    ref = jax.block_until_ready(resnet50fc_reference(x, params))

    assert out.shape == (B, 256 * L), out.shape
    assert jnp.allclose(out, ref, atol=1e-3, rtol=1e-3), float(jnp.max(jnp.abs(out - ref)))
    print("KERNEL_OK")
</pallas_src>

<mosaic_0001>
module attributes {stable_mosaic.version = 11 : i64} {
  func.func @kernel(%arg0: memref<1x32xf32, #tpu.memory_space<vmem>>, %arg1: memref<64x1xf32, #tpu.memory_space<vmem>>, %arg2: memref<64x1xf32, #tpu.memory_space<vmem>>, %arg3: memref<64x1xf32, #tpu.memory_space<vmem>>, %arg4: memref<128x64xf32, #tpu.memory_space<vmem>>, %arg5: memref<128x1xf32, #tpu.memory_space<vmem>>, %arg6: memref<128x1xf32, #tpu.memory_space<vmem>>, %arg7: memref<256x128xf32, #tpu.memory_space<vmem>>, %arg8: memref<256x1xf32, #tpu.memory_space<vmem>>, %arg9: memref<256x1xf32, #tpu.memory_space<vmem>>, %arg10: memref<2x256x16xf32, #tpu.memory_space<vmem>>) attributes {dimension_semantics = [], scalar_prefetch = 0 : i64, scratch_operands = 0 : i64, tpu.core_type = #tpu.core_type<tc>} {
    %c0 = arith.constant 0 : index
    %c0_0 = arith.constant 0 : index
    %0 = vector.load %arg0[%c0, %c0_0] : memref<1x32xf32, #tpu.memory_space<vmem>>, vector<1x32xf32>
    %c0_1 = arith.constant 0 : index
    %c0_2 = arith.constant 0 : index
    %1 = vector.load %arg1[%c0_1, %c0_2] : memref<64x1xf32, #tpu.memory_space<vmem>>, vector<64x1xf32>
    %2 = vector.broadcast %1 : vector<64x1xf32> to vector<64x32xf32>
    %3 = vector.broadcast %0 : vector<1x32xf32> to vector<64x32xf32>
    %4 = arith.mulf %2, %3 : vector<64x32xf32>
    %c0_3 = arith.constant 0 : index
    %c0_4 = arith.constant 0 : index
    %5 = vector.load %arg2[%c0_3, %c0_4] : memref<64x1xf32, #tpu.memory_space<vmem>>, vector<64x1xf32>
    %c0_5 = arith.constant 0 : index
    %c0_6 = arith.constant 0 : index
    %6 = vector.load %arg3[%c0_5, %c0_6] : memref<64x1xf32, #tpu.memory_space<vmem>>, vector<64x1xf32>
    %cst = arith.constant dense<0.000000e+00> : vector<64xf32>
    %7 = vector.multi_reduction <add>, %4, %cst [1] : vector<64x32xf32> to vector<64xf32>
    %8 = vector.shape_cast %7 : vector<64xf32> to vector<64x1xf32>
    %9 = arith.mulf %4, %4 : vector<64x32xf32>
    %cst_7 = arith.constant dense<0.000000e+00> : vector<64xf32>
    %10 = vector.multi_reduction <add>, %9, %cst_7 [1] : vector<64x32xf32> to vector<64xf32>
    %11 = vector.shape_cast %10 : vector<64xf32> to vector<64x1xf32>
    %cst_8 = arith.constant 3.125000e-02 : f32
    %12 = vector.broadcast %cst_8 : f32 to vector<64x1xf32>
    %13 = arith.mulf %8, %12 : vector<64x1xf32>
    %cst_9 = arith.constant 3.125000e-02 : f32
    %14 = vector.broadcast %cst_9 : f32 to vector<64x1xf32>
    %15 = arith.mulf %11, %14 : vector<64x1xf32>
    %16 = arith.mulf %13, %13 : vector<64x1xf32>
    %17 = arith.subf %15, %16 : vector<64x1xf32>
    %cst_10 = arith.constant 9.99999974E-6 : f32
    %18 = vector.broadcast %cst_10 : f32 to vector<64x1xf32>
    %19 = arith.addf %17, %18 : vector<64x1xf32>
    %20 = math.rsqrt %19 : vector<64x1xf32>
    %21 = arith.mulf %5, %20 : vector<64x1xf32>
    %22 = arith.mulf %13, %21 : vector<64x1xf32>
    %23 = arith.subf %6, %22 : vector<64x1xf32>
    %24 = vector.broadcast %21 : vector<64x1xf32> to vector<64x32xf32>
    %25 = arith.mulf %4, %24 : vector<64x32xf32>
    %26 = vector.broadcast %23 : vector<64x1xf32> to vector<64x32xf32>
    %27 = arith.addf %25, %26 : vector<64x32xf32>
    %cst_11 = arith.constant 0.000000e+00 : f32
    %28 = vector.broadcast %cst_11 : f32 to vector<64x32xf32>
    %29 = arith.maximumf %27, %28 : vector<64x32xf32>
    %c0_12 = arith.constant 0 : index
    %c0_13 = arith.constant 0 : index
    %30 = vector.load %arg4[%c0_12, %c0_13] : memref<128x64xf32, #tpu.memory_space<vmem>>, vector<128x64xf32>
    %cst_14 = arith.constant dense<0.000000e+00> : vector<128x32xf32>
    %31 = tpu.matmul %30, %29, %cst_14 {dimension_numbers = #tpu.dot_dimension_numbers<[1], [0], [0], [1], [0, 0, 1, 1], [], []>} : vector<128x64xf32>, vector<64x32xf32>, vector<128x32xf32> -> vector<128x32xf32>
    %c0_15 = arith.constant 0 : index
    %c0_16 = arith.constant 0 : index
    %32 = vector.load %arg5[%c0_15, %c0_16] : memref<128x1xf32, #tpu.memory_space<vmem>>, vector<128x1xf32>
    %c0_17 = arith.constant 0 : index
    %c0_18 = arith.constant 0 : index
    %33 = vector.load %arg6[%c0_17, %c0_18] : memref<128x1xf32, #tpu.memory_space<vmem>>, vector<128x1xf32>
    %cst_19 = arith.constant dense<0.000000e+00> : vector<128xf32>
    %34 = vector.multi_reduction <add>, %31, %cst_19 [1] : vector<128x32xf32> to vector<128xf32>
    %35 = vector.shape_cast %34 : vector<128xf32> to vector<128x1xf32>
    %36 = arith.mulf %31, %31 : vector<128x32xf32>
    %cst_20 = arith.constant dense<0.000000e+00> : vector<128xf32>
    %37 = vector.multi_reduction <add>, %36, %cst_20 [1] : vector<128x32xf32> to vector<128xf32>
    %38 = vector.shape_cast %37 : vector<128xf32> to vector<128x1xf32>
    %cst_21 = arith.constant 3.125000e-02 : f32
    %39 = vector.broadcast %cst_21 : f32 to vector<128x1xf32>
    %40 = arith.mulf %35, %39 : vector<128x1xf32>
    %cst_22 = arith.constant 3.125000e-02 : f32
    %41 = vector.broadcast %cst_22 : f32 to vector<128x1xf32>
    %42 = arith.mulf %38, %41 : vector<128x1xf32>
    %43 = arith.mulf %40, %40 : vector<128x1xf32>
    %44 = arith.subf %42, %43 : vector<128x1xf32>
    %cst_23 = arith.constant 9.99999974E-6 : f32
    %45 = vector.broadcast %cst_23 : f32 to vector<128x1xf32>
    %46 = arith.addf %44, %45 : vector<128x1xf32>
    %47 = math.rsqrt %46 : vector<128x1xf32>
    %48 = arith.mulf %32, %47 : vector<128x1xf32>
    %49 = arith.mulf %40, %48 : vector<128x1xf32>
    %50 = arith.subf %33, %49 : vector<128x1xf32>
    %51 = vector.broadcast %48 : vector<128x1xf32> to vector<128x32xf32>
    %52 = arith.mulf %31, %51 : vector<128x32xf32>
    %53 = vector.broadcast %50 : vector<128x1xf32> to vector<128x32xf32>
    %54 = arith.addf %52, %53 : vector<128x32xf32>
    %cst_24 = arith.constant 0.000000e+00 : f32
    %55 = vector.broadcast %cst_24 : f32 to vector<128x32xf32>
    %56 = arith.maximumf %54, %55 : vector<128x32xf32>
    %c0_25 = arith.constant 0 : index
    %c0_26 = arith.constant 0 : index
    %57 = vector.load %arg7[%c0_25, %c0_26] : memref<256x128xf32, #tpu.memory_space<vmem>>, vector<256x128xf32>
    %cst_27 = arith.constant dense<0.000000e+00> : vector<256x32xf32>
    %58 = tpu.matmul %57, %56, %cst_27 {dimension_numbers = #tpu.dot_dimension_numbers<[1], [0], [0], [1], [0, 0, 1, 1], [], []>} : vector<256x128xf32>, vector<128x32xf32>, vector<256x32xf32> -> vector<256x32xf32>
    %c0_28 = arith.constant 0 : index
    %c0_29 = arith.constant 0 : index
    %59 = vector.load %arg8[%c0_28, %c0_29] : memref<256x1xf32, #tpu.memory_space<vmem>>, vector<256x1xf32>
    %c0_30 = arith.constant 0 : index
    %c0_31 = arith.constant 0 : index
    %60 = vector.load %arg9[%c0_30, %c0_31] : memref<256x1xf32, #tpu.memory_space<vmem>>, vector<256x1xf32>
    %cst_32 = arith.constant dense<0.000000e+00> : vector<256xf32>
    %61 = vector.multi_reduction <add>, %58, %cst_32 [1] : vector<256x32xf32> to vector<256xf32>
    %62 = vector.shape_cast %61 : vector<256xf32> to vector<256x1xf32>
    %63 = arith.mulf %58, %58 : vector<256x32xf32>
    %cst_33 = arith.constant dense<0.000000e+00> : vector<256xf32>
    %64 = vector.multi_reduction <add>, %63, %cst_33 [1] : vector<256x32xf32> to vector<256xf32>
    %65 = vector.shape_cast %64 : vector<256xf32> to vector<256x1xf32>
    %cst_34 = arith.constant 3.125000e-02 : f32
    %66 = vector.broadcast %cst_34 : f32 to vector<256x1xf32>
    %67 = arith.mulf %62, %66 : vector<256x1xf32>
    %cst_35 = arith.constant 3.125000e-02 : f32
    %68 = vector.broadcast %cst_35 : f32 to vector<256x1xf32>
    %69 = arith.mulf %65, %68 : vector<256x1xf32>
    %70 = arith.mulf %67, %67 : vector<256x1xf32>
    %71 = arith.subf %69, %70 : vector<256x1xf32>
    %cst_36 = arith.constant 9.99999974E-6 : f32
    %72 = vector.broadcast %cst_36 : f32 to vector<256x1xf32>
    %73 = arith.addf %71, %72 : vector<256x1xf32>
    %74 = math.rsqrt %73 : vector<256x1xf32>
    %75 = arith.mulf %59, %74 : vector<256x1xf32>
    %76 = arith.mulf %67, %75 : vector<256x1xf32>
    %77 = arith.subf %60, %76 : vector<256x1xf32>
    %78 = vector.broadcast %75 : vector<256x1xf32> to vector<256x32xf32>
    %79 = arith.mulf %58, %78 : vector<256x32xf32>
    %80 = vector.broadcast %77 : vector<256x1xf32> to vector<256x32xf32>
    %81 = arith.addf %79, %80 : vector<256x32xf32>
    %cst_37 = arith.constant 0.000000e+00 : f32
    %82 = vector.broadcast %cst_37 : f32 to vector<256x32xf32>
    %83 = arith.maximumf %81, %82 : vector<256x32xf32>
    %84 = vector.extract_strided_slice %83 {offsets = [0, 0], sizes = [256, 16], strides = [1, 1]} : vector<256x32xf32> to vector<256x16xf32>
    %c0_38 = arith.constant 0 : index
    %c0_39 = arith.constant 0 : index
    %c0_40 = arith.constant 0 : index
    %85 = vector.load %arg10[%c0_38, %c0_39, %c0_40] : memref<2x256x16xf32, #tpu.memory_space<vmem>>, vector<1x256x16xf32>
    %86 = vector.shape_cast %85 : vector<1x256x16xf32> to vector<256x16xf32>
    %87 = vector.shape_cast %84 : vector<256x16xf32> to vector<1x256x16xf32>
    tpu.vector_store %arg10[%c0_38, %c0_39, %c0_40], %87 {strides = array<i32>} : memref<2x256x16xf32, #tpu.memory_space<vmem>>, vector<1x256x16xf32>,
    %88 = vector.extract_strided_slice %83 {offsets = [0, 16], sizes = [256, 16], strides = [1, 1]} : vector<256x32xf32> to vector<256x16xf32>
    %c1 = arith.constant 1 : index
    %c0_41 = arith.constant 0 : index
    %c0_42 = arith.constant 0 : index
    %89 = vector.load %arg10[%c1, %c0_41, %c0_42] : memref<2x256x16xf32, #tpu.memory_space<vmem>>, vector<1x256x16xf32>
    %90 = vector.shape_cast %89 : vector<1x256x16xf32> to vector<256x16xf32>
    %91 = vector.shape_cast %88 : vector<256x16xf32> to vector<1x256x16xf32>
    tpu.vector_store %arg10[%c1, %c0_41, %c0_42], %91 {strides = array<i32>} : memref<2x256x16xf32, #tpu.memory_space<vmem>>, vector<1x256x16xf32>,
    return
  }
}

</mosaic_0001>

<llo_original>
// kernel: tpu_custom_call.1
$region0: #{tpu_custom_call.1}
  #allocation0 [shape = 'u32[]', space=smem, size = 0x4, offset = 0x4, fixed_abs, tag = 'smem constant byte address 0x4 - core index']
  #allocation1 [shape = 'u32[144,128]{1,0:T(1,128)}', space=vmem, size = 0x12000, scoped, tag = 'internal scratch']
  %s0 = inlined_call_operand.vmem [shape: f32[1,32], index: 0, kind: input, shape index: {}]
  %s1 = inlined_call_operand.vmem [shape: f32[64,1], index: 1, kind: input, shape index: {}]
  %s2 = inlined_call_operand.vmem [shape: f32[64,1], index: 2, kind: input, shape index: {}]
  %s3 = inlined_call_operand.vmem [shape: f32[64,1], index: 3, kind: input, shape index: {}]
  %s4 = inlined_call_operand.vmem [shape: f32[128,64], index: 4, kind: input, shape index: {}]
  %s5 = inlined_call_operand.vmem [shape: f32[128,1], index: 5, kind: input, shape index: {}]
  %s6 = inlined_call_operand.vmem [shape: f32[128,1], index: 6, kind: input, shape index: {}]
  %s7 = inlined_call_operand.vmem [shape: f32[256,128], index: 7, kind: input, shape index: {}]
  %s8 = inlined_call_operand.vmem [shape: f32[256,1], index: 8, kind: input, shape index: {}]
  %s9 = inlined_call_operand.vmem [shape: f32[256,1], index: 9, kind: input, shape index: {}]
  %s10 = inlined_call_operand.vmem [shape: f32[2,256,16], index: 10, kind: output, shape index: {}]
  %s11 = sld [smem:[#allocation0]]
  $region50: #{tpu_custom_call.1} parent=0
    _
  %s13 = ssub.s32 1, %s11
  %s14 = scalar_select 0, %s13, %s11
  // Predicated region
  $region2: #{tpu_custom_call.1} parent=0 // pred_check
    _
  $region3: #{tpu_custom_call.1} parent=0 // pred_check_branch
    %16 = sbr.rel (0) target = $region5
  $region4: #{tpu_custom_call.1} parent=0 // pred_region
    _
  $region5: #{tpu_custom_call.1} parent=0 // pred_fallthru
    _
  // Predicated region
  $region6: #{tpu_custom_call.1} parent=0 // pred_check
    _
  $region7: #{tpu_custom_call.1} parent=0 // pred_check_branch
    %18 = sbr.rel (0) target = $region9
  $region8: #{tpu_custom_call.1} parent=0 // pred_region
    _
  $region9: #{tpu_custom_call.1} parent=0 // pred_fallthru
    _
  // Predicated region
  $region10: #{tpu_custom_call.1} parent=0 // pred_check
    _
  $region11: #{tpu_custom_call.1} parent=0 // pred_check_branch
    %20 = sbr.rel (0) target = $region13
  $region12: #{tpu_custom_call.1} parent=0 // pred_region
    _
  $region13: #{tpu_custom_call.1} parent=0 // pred_fallthru
    _
  // Predicated region
  $region14: #{tpu_custom_call.1} parent=0 // pred_check
    _
  $region15: #{tpu_custom_call.1} parent=0 // pred_check_branch
    %22 = sbr.rel (0) target = $region17
  $region16: #{tpu_custom_call.1} parent=0 // pred_region
    _
  $region17: #{tpu_custom_call.1} parent=0 // pred_fallthru
    _
  // Predicated region
  $region18: #{tpu_custom_call.1} parent=0 // pred_check
    _
  $region19: #{tpu_custom_call.1} parent=0 // pred_check_branch
    %24 = sbr.rel (0) target = $region21
  $region20: #{tpu_custom_call.1} parent=0 // pred_region
    _
  $region21: #{tpu_custom_call.1} parent=0 // pred_fallthru
    _
  // Predicated region
  $region22: #{tpu_custom_call.1} parent=0 // pred_check
    _
  $region23: #{tpu_custom_call.1} parent=0 // pred_check_branch
    %26 = sbr.rel (0) target = $region25
  $region24: #{tpu_custom_call.1} parent=0 // pred_region
    _
  $region25: #{tpu_custom_call.1} parent=0 // pred_fallthru
    _
  // Predicated region
  $region26: #{tpu_custom_call.1} parent=0 // pred_check
    _
  $region27: #{tpu_custom_call.1} parent=0 // pred_check_branch
    %28 = sbr.rel (0) target = $region29
  $region28: #{tpu_custom_call.1} parent=0 // pred_region
    _
  $region29: #{tpu_custom_call.1} parent=0 // pred_fallthru
    _
  // Predicated region
  $region30: #{tpu_custom_call.1} parent=0 // pred_check
    _
  $region31: #{tpu_custom_call.1} parent=0 // pred_check_branch
    %30 = sbr.rel (0) target = $region33
  $region32: #{tpu_custom_call.1} parent=0 // pred_region
    _
  $region33: #{tpu_custom_call.1} parent=0 // pred_fallthru
    _
  // Predicated region
  $region34: #{tpu_custom_call.1} parent=0 // pred_check
    _
  $region35: #{tpu_custom_call.1} parent=0 // pred_check_branch
    %32 = sbr.rel (0) target = $region37
  $region36: #{tpu_custom_call.1} parent=0 // pred_region
    _
  $region37: #{tpu_custom_call.1} parent=0 // pred_fallthru
    _
  // Predicated region
  $region38: #{tpu_custom_call.1} parent=0 // pred_check
    _
  $region39: #{tpu_custom_call.1} parent=0 // pred_check_branch
    %34 = sbr.rel (0) target = $region41
  $region40: #{tpu_custom_call.1} parent=0 // pred_region
    _
  $region41: #{tpu_custom_call.1} parent=0 // pred_fallthru
    _
  %v35 = vld [vmem:[%s0] sm:$0x1]
  %v36 = vld [vmem:[%s1] sm:$0xff]
  %v37 = vld [vmem:[%s1 + $0x8] sm:$0xff]
  %v38 = vld [vmem:[%s1 + $0x10] sm:$0xff]
  %v39 = vld [vmem:[%s1 + $0x18] sm:$0xff]
  %v40 = vld [vmem:[%s1 + $0x20] sm:$0xff]
  %v41 = vld [vmem:[%s1 + $0x28] sm:$0xff]
  %v42 = vld [vmem:[%s1 + $0x30] sm:$0xff]
  %v43 = vld [vmem:[%s1 + $0x38] sm:$0xff]
  %45 = vset.pattern.permute.xlu0 0
  %46 = vperm.xlu0 %45, %v36
  %v47 = vpop.permute.xlu0 %46
  %50 = vset.pattern.permute.xlu0 0
  %51 = vperm.xlu0 %50, %v37
  %v52 = vpop.permute.xlu0 %51
  %55 = vset.pattern.permute.xlu0 0
  %56 = vperm.xlu0 %55, %v38
  %v57 = vpop.permute.xlu0 %56
  %60 = vset.pattern.permute.xlu0 0
  %61 = vperm.xlu0 %60, %v39
  %v62 = vpop.permute.xlu0 %61
  %65 = vset.pattern.permute.xlu0 0
  %66 = vperm.xlu0 %65, %v40
  %v67 = vpop.permute.xlu0 %66
  %70 = vset.pattern.permute.xlu0 0
  %71 = vperm.xlu0 %70, %v41
  %v72 = vpop.permute.xlu0 %71
  %75 = vset.pattern.permute.xlu0 0
  %76 = vperm.xlu0 %75, %v42
  %v77 = vpop.permute.xlu0 %76
  %80 = vset.pattern.permute.xlu0 0
  %81 = vperm.xlu0 %80, %v43
  %v82 = vpop.permute.xlu0 %81
  %v85 = vlaneseq
  %v86 = vshrl.u32 %v85, 7
  %v87 = vsub.s32 0, %v86
  %v88 = vrot.slane %v35, %v87
  %v90 = vmul.f32 %v47, %v88
  %v91 = vmul.f32 %v52, %v88
  %v92 = vmul.f32 %v57, %v88
  %v93 = vmul.f32 %v62, %v88
  %v94 = vmul.f32 %v67, %v88
  %v95 = vmul.f32 %v72, %v88
  %v96 = vmul.f32 %v77, %v88
  %v97 = vmul.f32 %v82, %v88
  %v98 = vld [vmem:[%s2] sm:$0xff]
  %v99 = vld [vmem:[%s2 + $0x8] sm:$0xff]
  %v100 = vld [vmem:[%s2 + $0x10] sm:$0xff]
  %v101 = vld [vmem:[%s2 + $0x18] sm:$0xff]
  %v102 = vld [vmem:[%s2 + $0x20] sm:$0xff]
  %v103 = vld [vmem:[%s2 + $0x28] sm:$0xff]
  %v104 = vld [vmem:[%s2 + $0x30] sm:$0xff]
  %v105 = vld [vmem:[%s2 + $0x38] sm:$0xff]
  %v106 = vld [vmem:[%s3] sm:$0xff]
  %v107 = vld [vmem:[%s3 + $0x8] sm:$0xff]
  %v108 = vld [vmem:[%s3 + $0x10] sm:$0xff]
  %v109 = vld [vmem:[%s3 + $0x18] sm:$0xff]
  %v110 = vld [vmem:[%s3 + $0x20] sm:$0xff]
  %v111 = vld [vmem:[%s3 + $0x28] sm:$0xff]
  %v112 = vld [vmem:[%s3 + $0x30] sm:$0xff]
  %v113 = vld [vmem:[%s3 + $0x38] sm:$0xff]
  %vm114 = vcmask 261120
  %v115 = vsel %vm114, %v90, 0.0
  %116 = vadd.xlane.f32.xlu0 %v115
  %v117 = vpop.xlane.xlu0 %116
  %v118 = vsel %vm114, %v91, 0.0
  %119 = vadd.xlane.f32.xlu0 %v118
  %v120 = vpop.xlane.xlu0 %119
  %v121 = vsel %vm114, %v92, 0.0
  %122 = vadd.xlane.f32.xlu0 %v121
  %v123 = vpop.xlane.xlu0 %122
  %v124 = vsel %vm114, %v93, 0.0
  %125 = vadd.xlane.f32.xlu0 %v124
  %v126 = vpop.xlane.xlu0 %125
  %v127 = vsel %vm114, %v94, 0.0
  %128 = vadd.xlane.f32.xlu0 %v127
  %v129 = vpop.xlane.xlu0 %128
  %v130 = vsel %vm114, %v95, 0.0
  %131 = vadd.xlane.f32.xlu0 %v130
  %v132 = vpop.xlane.xlu0 %131
  %v133 = vsel %vm114, %v96, 0.0
  %134 = vadd.xlane.f32.xlu0 %v133
  %v135 = vpop.xlane.xlu0 %134
  %v136 = vsel %vm114, %v97, 0.0
  %137 = vadd.xlane.f32.xlu0 %v136
  %v138 = vpop.xlane.xlu0 %137
  %v139 = vmul.f32 %v90, %v90
  %v140 = vmul.f32 %v91, %v91
  %v141 = vmul.f32 %v92, %v92
  %v142 = vmul.f32 %v93, %v93
  %v143 = vmul.f32 %v94, %v94
  %v144 = vmul.f32 %v95, %v95
  %v145 = vmul.f32 %v96, %v96
  %v146 = vmul.f32 %v97, %v97
  %v147 = vsel %vm114, %v139, 0.0
  %148 = vadd.xlane.f32.xlu0 %v147
  %v149 = vpop.xlane.xlu0 %148
  %v150 = vsel %vm114, %v140, 0.0
  %151 = vadd.xlane.f32.xlu0 %v150
  %v152 = vpop.xlane.xlu0 %151
  %v153 = vsel %vm114, %v141, 0.0
  %154 = vadd.xlane.f32.xlu0 %v153
  %v155 = vpop.xlane.xlu0 %154
  %v156 = vsel %vm114, %v142, 0.0
  %157 = vadd.xlane.f32.xlu0 %v156
  %v158 = vpop.xlane.xlu0 %157
  %v159 = vsel %vm114, %v143, 0.0
  %160 = vadd.xlane.f32.xlu0 %v159
  %v161 = vpop.xlane.xlu0 %160
  %v162 = vsel %vm114, %v144, 0.0
  %163 = vadd.xlane.f32.xlu0 %v162
  %v164 = vpop.xlane.xlu0 %163
  %v165 = vsel %vm114, %v145, 0.0
  %166 = vadd.xlane.f32.xlu0 %v165
  %v167 = vpop.xlane.xlu0 %166
  %v168 = vsel %vm114, %v146, 0.0
  %169 = vadd.xlane.f32.xlu0 %v168
  %v170 = vpop.xlane.xlu0 %169
  %v171 = vmul.f32 %v117, 0.03125
  %v172 = vmul.f32 %v120, 0.03125
  %v173 = vmul.f32 %v123, 0.03125
  %v174 = vmul.f32 %v126, 0.03125
  %v175 = vmul.f32 %v129, 0.03125
  %v176 = vmul.f32 %v132, 0.03125
  %v177 = vmul.f32 %v135, 0.03125
  %v178 = vmul.f32 %v138, 0.03125
  %v179 = vmul.f32 %v149, 0.03125
  %v180 = vmul.f32 %v152, 0.03125
  %v181 = vmul.f32 %v155, 0.03125
  %v182 = vmul.f32 %v158, 0.03125
  %v183 = vmul.f32 %v161, 0.03125
  %v184 = vmul.f32 %v164, 0.03125
  %v185 = vmul.f32 %v167, 0.03125
  %v186 = vmul.f32 %v170, 0.03125
  %v187 = vmul.f32 %v171, %v171
  %v188 = vmul.f32 %v172, %v172
  %v189 = vmul.f32 %v173, %v173
  %v190 = vmul.f32 %v174, %v174
  %v191 = vmul.f32 %v175, %v175
  %v192 = vmul.f32 %v176, %v176
  %v193 = vmul.f32 %v177, %v177
  %v194 = vmul.f32 %v178, %v178
  %v195 = vsub.f32 %v179, %v187
  %v196 = vsub.f32 %v180, %v188
  %v197 = vsub.f32 %v181, %v189
  %v198 = vsub.f32 %v182, %v190
  %v199 = vsub.f32 %v183, %v191
  %v200 = vsub.f32 %v184, %v192
  %v201 = vsub.f32 %v185, %v193
  %v202 = vsub.f32 %v186, %v194
  %v203 = vadd.f32 %v195, 1e-05
  %v204 = vadd.f32 %v196, 1e-05
  %v205 = vadd.f32 %v197, 1e-05
  %v206 = vadd.f32 %v198, 1e-05
  %v207 = vadd.f32 %v199, 1e-05
  %v208 = vadd.f32 %v200, 1e-05
  %v209 = vadd.f32 %v201, 1e-05
  %v210 = vadd.f32 %v202, 1e-05
  %v211 = vrsqrt.pop %v203
  %v212 = vrsqrt.pop %v204
  %v213 = vrsqrt.pop %v205
  %v214 = vrsqrt.pop %v206
  %v215 = vrsqrt.pop %v207
  %v216 = vrsqrt.pop %v208
  %v217 = vrsqrt.pop %v209
  %v218 = vrsqrt.pop %v210
  %v219 = vmul.f32 %v98, %v211
  %v220 = vmul.f32 %v99, %v212
  %v221 = vmul.f32 %v100, %v213
  %v222 = vmul.f32 %v101, %v214
  %v223 = vmul.f32 %v102, %v215
  %v224 = vmul.f32 %v103, %v216
  %v225 = vmul.f32 %v104, %v217
  %v226 = vmul.f32 %v105, %v218
  %v227 = vmul.f32 %v171, %v219
  %v228 = vmul.f32 %v172, %v220
  %v229 = vmul.f32 %v173, %v221
  %v230 = vmul.f32 %v174, %v222
  %v231 = vmul.f32 %v175, %v223
  %v232 = vmul.f32 %v176, %v224
  %v233 = vmul.f32 %v177, %v225
  %v234 = vmul.f32 %v178, %v226
  %v235 = vsub.f32 %v106, %v227
  %v236 = vsub.f32 %v107, %v228
  %v237 = vsub.f32 %v108, %v229
  %v238 = vsub.f32 %v109, %v230
  %v239 = vsub.f32 %v110, %v231
  %v240 = vsub.f32 %v111, %v232
  %v241 = vsub.f32 %v112, %v233
  %v242 = vsub.f32 %v113, %v234
  %244 = vset.pattern.permute.xlu0 0
  %245 = vperm.xlu0 %244, %v219
  %v246 = vpop.permute.xlu0 %245
  %249 = vset.pattern.permute.xlu0 0
  %250 = vperm.xlu0 %249, %v220
  %v251 = vpop.permute.xlu0 %250
  %254 = vset.pattern.permute.xlu0 0
  %255 = vperm.xlu0 %254, %v221
  %v256 = vpop.permute.xlu0 %255
  %259 = vset.pattern.permute.xlu0 0
  %260 = vperm.xlu0 %259, %v222
  %v261 = vpop.permute.xlu0 %260
  %264 = vset.pattern.permute.xlu0 0
  %265 = vperm.xlu0 %264, %v223
  %v266 = vpop.permute.xlu0 %265
  %269 = vset.pattern.permute.xlu0 0
  %270 = vperm.xlu0 %269, %v224
  %v271 = vpop.permute.xlu0 %270
  %274 = vset.pattern.permute.xlu0 0
  %275 = vperm.xlu0 %274, %v225
  %v276 = vpop.permute.xlu0 %275
  %279 = vset.pattern.permute.xlu0 0
  %280 = vperm.xlu0 %279, %v226
  %v281 = vpop.permute.xlu0 %280
  %v283 = vmul.f32 %v90, %v246
  %v284 = vmul.f32 %v91, %v251
  %v285 = vmul.f32 %v92, %v256
  %v286 = vmul.f32 %v93, %v261
  %v287 = vmul.f32 %v94, %v266
  %v288 = vmul.f32 %v95, %v271
  %v289 = vmul.f32 %v96, %v276
  %v290 = vmul.f32 %v97, %v281
  %292 = vset.pattern.permute.xlu0 0
  %293 = vperm.xlu0 %292, %v235
  %v294 = vpop.permute.xlu0 %293
  %297 = vset.pattern.permute.xlu0 0
  %298 = vperm.xlu0 %297, %v236
  %v299 = vpop.permute.xlu0 %298
  %302 = vset.pattern.permute.xlu0 0
  %303 = vperm.xlu0 %302, %v237
  %v304 = vpop.permute.xlu0 %303
  %307 = vset.pattern.permute.xlu0 0
  %308 = vperm.xlu0 %307, %v238
  %v309 = vpop.permute.xlu0 %308
  %312 = vset.pattern.permute.xlu0 0
  %313 = vperm.xlu0 %312, %v239
  %v314 = vpop.permute.xlu0 %313
  %317 = vset.pattern.permute.xlu0 0
  %318 = vperm.xlu0 %317, %v240
  %v319 = vpop.permute.xlu0 %318
  %322 = vset.pattern.permute.xlu0 0
  %323 = vperm.xlu0 %322, %v241
  %v324 = vpop.permute.xlu0 %323
  %327 = vset.pattern.permute.xlu0 0
  %328 = vperm.xlu0 %327, %v242
  %v329 = vpop.permute.xlu0 %328
  %v331 = vadd.f32 %v283, %v294
  %v332 = vadd.f32 %v284, %v299
  %v333 = vadd.f32 %v285, %v304
  %v334 = vadd.f32 %v286, %v309
  %v335 = vadd.f32 %v287, %v314
  %v336 = vadd.f32 %v288, %v319
  %v337 = vadd.f32 %v289, %v324
  %v338 = vadd.f32 %v290, %v329
  %v339 = vmax.f32 %v331, 0.0
  %v340 = vmax.f32 %v332, 0.0
  %v341 = vmax.f32 %v333, 0.0
  %v342 = vmax.f32 %v334, 0.0
  %v343 = vmax.f32 %v335, 0.0
  %v344 = vmax.f32 %v336, 0.0
  %v345 = vmax.f32 %v337, 0.0
  %v346 = vmax.f32 %v338, 0.0
  %v347 = vld [vmem:[%s4] sm:$0xff]
  %v348 = vld [vmem:[%s4 + $0x8] sm:$0xff]
  %v349 = vld [vmem:[%s4 + $0x10] sm:$0xff]
  %v350 = vld [vmem:[%s4 + $0x18] sm:$0xff]
  %v351 = vld [vmem:[%s4 + $0x20] sm:$0xff]
  %v352 = vld [vmem:[%s4 + $0x28] sm:$0xff]
  %v353 = vld [vmem:[%s4 + $0x30] sm:$0xff]
  %v354 = vld [vmem:[%s4 + $0x38] sm:$0xff]
  %v355 = vld [vmem:[%s4 + $0x40] sm:$0xff]
  %v356 = vld [vmem:[%s4 + $0x48] sm:$0xff]
  %v357 = vld [vmem:[%s4 + $0x50] sm:$0xff]
  %v358 = vld [vmem:[%s4 + $0x58] sm:$0xff]
  %v359 = vld [vmem:[%s4 + $0x60] sm:$0xff]
  %v360 = vld [vmem:[%s4 + $0x68] sm:$0xff]
  %v361 = vld [vmem:[%s4 + $0x70] sm:$0xff]
  %v362 = vld [vmem:[%s4 + $0x78] sm:$0xff]
  %vm363 = vcmask 523264
  %v365 = vsel %vm363, %v347, 0
  %v368 = vsel %vm363, %v348, 0
  %v371 = vsel %vm363, %v349, 0
  %v374 = vsel %vm363, %v350, 0
  %v377 = vsel %vm363, %v351, 0
  %v380 = vsel %vm363, %v352, 0
  %v383 = vsel %vm363, %v353, 0
  %v386 = vsel %vm363, %v354, 0
  %v389 = vsel %vm363, %v355, 0
  %v392 = vsel %vm363, %v356, 0
  %v395 = vsel %vm363, %v357, 0
  %v398 = vsel %vm363, %v358, 0
  %v401 = vsel %vm363, %v359, 0
  %v404 = vsel %vm363, %v360, 0
  %v407 = vsel %vm363, %v361, 0
  %v410 = vsel %vm363, %v362, 0
  %412 = vmatprep.subr.mxu0 0.0
  %413 = vmatpush1.msra.mxu0 %v339
  %414 = vmatprep.subr.mxu0 0.0
  %415 = vmatpush1.msra.mxu0 %v340
  %416 = vmatprep.subr.mxu0 0.0
  %417 = vmatpush1.msra.mxu0 %v341
  %418 = vmatprep.subr.mxu0 0.0
  %419 = vmatpush1.msra.mxu0 %v342
  %420 = vmatprep.subr.mxu0 0.0
  %421 = vmatpush1.msra.mxu0 %v343
  %422 = vmatprep.subr.mxu0 0.0
  %423 = vmatpush1.msra.mxu0 %v344
  %424 = vmatprep.subr.mxu0 0.0
  %425 = vmatpush1.msra.mxu0 %v345
  %426 = vmatprep.subr.mxu0 0.0
  %427 = vmatpush1.msra.mxu0 %v346
  %428 = vmatprep.subr.mxu0 0.0
  %429 = vmatpush1.msra.mxu0 0.0
  %430 = vmatprep.subr.mxu0 0.0
  %431 = vmatpush1.msra.mxu0 0.0
  %432 = vmatprep.subr.mxu0 0.0
  %433 = vmatpush1.msra.mxu0 0.0
  %434 = vmatprep.subr.mxu0 0.0
  %435 = vmatpush1.msra.mxu0 0.0
  %436 = vmatprep.subr.mxu0 0.0
  %437 = vmatpush1.msra.mxu0 0.0
  %438 = vmatprep.subr.mxu0 0.0
  %439 = vmatpush1.msra.mxu0 0.0
  %440 = vmatprep.subr.mxu0 0.0
  %441 = vmatpush1.msra.mxu0 0.0
  %442 = vmatprep.subr.mxu0 0.0
  %443 = vmatpush1.msra.mxu0 0.0
  %444 = vmatprep.subr.mxu0 0.0
  %445 = vmatpush1.msra.mxu0 0.0
  %446 = vmatprep.subr.mxu0 0.0
  %447 = vmatpush1.msra.mxu0 0.0
  %448 = vmatprep.subr.mxu0 0.0
  %449 = vmatpush1.msra.mxu0 0.0
  %450 = vmatprep.subr.mxu0 0.0
  %451 = vmatpush1.msra.mxu0 0.0
  %452 = vmatprep.subr.mxu0 0.0
  %453 = vmatpush1.msra.mxu0 0.0
  %454 = vmatprep.subr.mxu0 0.0
  %455 = vmatpush1.msra.mxu0 0.0
  %456 = vmatprep.subr.mxu0 0.0
  %457 = vmatpush1.msra.mxu0 0.0
  %458 = vmatprep.subr.mxu0 0.0
  %459 = vmatpush1.msra.mxu0 0.0
  %460 = vmatprep.subr.mxu0 0.0
  %461 = vmatpush1.msra.mxu0 0.0
  %462 = vmatprep.subr.mxu0 0.0
  %463 = vmatpush1.msra.mxu0 0.0
  %464 = vmatprep.subr.mxu0 0.0
  %465 = vmatpush1.msra.mxu0 0.0
  %466 = vmatprep.subr.mxu0 0.0
  %467 = vmatpush1.msra.mxu0 0.0
  %468 = vmatprep.subr.mxu0 0.0
  %469 = vmatpush1.msra.mxu0 0.0
  %470 = vmatprep.subr.mxu0 0.0
  %471 = vmatpush1.msra.mxu0 0.0
  %472 = vmatprep.subr.mxu0 0.0
  %473 = vmatpush1.msra.mxu0 0.0
  %474 = vmatprep.subr.mxu0 0.0
  %475 = vmatpush1.msra.mxu0 0.0
  %476 = vmatprep.mubr.f32.mxu0 0.0
  %477 = vmatmul.mubr.f32.gmra.mrb[0].mxu0 %v365
  %v478 = vpop.f32.mrb[0].mxu0
  %v479 = vadd.f32 0.0, %v478
  %v480 = vpop.f32.mrb[0].mxu0
  %481 = vmatprep.mubr.f32.mxu0 0.0
  %482 = vmatmul.mubr.f32.gmra.mrb[0].mxu0 %v368
  %v483 = vpop.f32.mrb[0].mxu0
  %v484 = vadd.f32 0.0, %v483
  %v485 = vpop.f32.mrb[0].mxu0
  %486 = vmatprep.mubr.f32.mxu0 0.0
  %487 = vmatmul.mubr.f32.gmra.mrb[0].mxu0 %v371
  %v488 = vpop.f32.mrb[0].mxu0
  %v489 = vadd.f32 0.0, %v488
  %v490 = vpop.f32.mrb[0].mxu0
  %491 = vmatprep.mubr.f32.mxu0 0.0
  %492 = vmatmul.mubr.f32.gmra.mrb[0].mxu0 %v374
  %v493 = vpop.f32.mrb[0].mxu0
  %v494 = vadd.f32 0.0, %v493
  %v495 = vpop.f32.mrb[0].mxu0
  %496 = vmatprep.mubr.f32.mxu0 0.0
  %497 = vmatmul.mubr.f32.gmra.mrb[0].mxu0 %v377
  %v498 = vpop.f32.mrb[0].mxu0
  %v499 = vadd.f32 0.0, %v498
  %v500 = vpop.f32.mrb[0].mxu0
  %501 = vmatprep.mubr.f32.mxu0 0.0
  %502 = vmatmul.mubr.f32.gmra.mrb[0].mxu0 %v380
  %v503 = vpop.f32.mrb[0].mxu0
  %v504 = vadd.f32 0.0, %v503
  %v505 = vpop.f32.mrb[0].mxu0
  %506 = vmatprep.mubr.f32.mxu0 0.0
  %507 = vmatmul.mubr.f32.gmra.mrb[0].mxu0 %v383
  %v508 = vpop.f32.mrb[0].mxu0
  %v509 = vadd.f32 0.0, %v508
  %v510 = vpop.f32.mrb[0].mxu0
  %511 = vmatprep.mubr.f32.mxu0 0.0
  %512 = vmatmul.mubr.f32.gmra.mrb[0].mxu0 %v386
  %v513 = vpop.f32.mrb[0].mxu0
  %v514 = vadd.f32 0.0, %v513
  %v515 = vpop.f32.mrb[0].mxu0
  %516 = vmatprep.mubr.f32.mxu0 0.0
  %517 = vmatmul.mubr.f32.gmra.mrb[0].mxu0 %v389
  %v518 = vpop.f32.mrb[0].mxu0
  %v519 = vadd.f32 0.0, %v518
  %v520 = vpop.f32.mrb[0].mxu0
  %521 = vmatprep.mubr.f32.mxu0 0.0
  %522 = vmatmul.mubr.f32.gmra.mrb[0].mxu0 %v392
  %v523 = vpop.f32.mrb[0].mxu0
  %v524 = vadd.f32 0.0, %v523
  %v525 = vpop.f32.mrb[0].mxu0
  %526 = vmatprep.mubr.f32.mxu0 0.0
  %527 = vmatmul.mubr.f32.gmra.mrb[0].mxu0 %v395
  %v528 = vpop.f32.mrb[0].mxu0
  %v529 = vadd.f32 0.0, %v528
  %v530 = vpop.f32.mrb[0].mxu0
  %531 = vmatprep.mubr.f32.mxu0 0.0
  %532 = vmatmul.mubr.f32.gmra.mrb[0].mxu0 %v398
  %v533 = vpop.f32.mrb[0].mxu0
  %v534 = vadd.f32 0.0, %v533
  %v535 = vpop.f32.mrb[0].mxu0
  %536 = vmatprep.mubr.f32.mxu0 0.0
  %537 = vmatmul.mubr.f32.gmra.mrb[0].mxu0 %v401
  %v538 = vpop.f32.mrb[0].mxu0
  %v539 = vadd.f32 0.0, %v538
  %v540 = vpop.f32.mrb[0].mxu0
  %541 = vmatprep.mubr.f32.mxu0 0.0
  %542 = vmatmul.mubr.f32.gmra.mrb[0].mxu0 %v404
  %v543 = vpop.f32.mrb[0].mxu0
  %v544 = vadd.f32 0.0, %v543
  %v545 = vpop.f32.mrb[0].mxu0
  %546 = vmatprep.mubr.f32.mxu0 0.0
  %547 = vmatmul.mubr.f32.gmra.mrb[0].mxu0 %v407
  %v548 = vpop.f32.mrb[0].mxu0
  %v549 = vadd.f32 0.0, %v548
  %v550 = vpop.f32.mrb[0].mxu0
  %551 = vmatprep.mubr.f32.mxu0 0.0
  %552 = vmatmul.mubr.f32.gmra.mrb[0].mxu0 %v410
  %v553 = vpop.f32.mrb[0].mxu0
  %v554 = vadd.f32 0.0, %v553
  %v555 = vpop.f32.mrb[0].mxu0
  %556 = vdwg.mxu0
  %v557 = vld [vmem:[%s5] sm:$0xff]
  %v558 = vld [vmem:[%s5 + $0x8] sm:$0xff]
  %v559 = vld [vmem:[%s5 + $0x10] sm:$0xff]
  %v560 = vld [vmem:[%s5 + $0x18] sm:$0xff]
  %v561 = vld [vmem:[%s5 + $0x20] sm:$0xff]
  %v562 = vld [vmem:[%s5 + $0x28] sm:$0xff]
  %v563 = vld [vmem:[%s5 + $0x30] sm:$0xff]
  %v564 = vld [vmem:[%s5 + $0x38] sm:$0xff]
  %v565 = vld [vmem:[%s5 + $0x40] sm:$0xff]
  %v566 = vld [vmem:[%s5 + $0x48] sm:$0xff]
  %v567 = vld [vmem:[%s5 + $0x50] sm:$0xff]
  %v568 = vld [vmem:[%s5 + $0x58] sm:$0xff]
  %v569 = vld [vmem:[%s5 + $0x60] sm:$0xff]
  %v570 = vld [vmem:[%s5 + $0x68] sm:$0xff]
  %v571 = vld [vmem:[%s5 + $0x70] sm:$0xff]
  %v572 = vld [vmem:[%s5 + $0x78] sm:$0xff]
  %v573 = vld [vmem:[%s6] sm:$0xff]
  %v574 = vld [vmem:[%s6 + $0x8] sm:$0xff]
  %v575 = vld [vmem:[%s6 + $0x10] sm:$0xff]
  %v576 = vld [vmem:[%s6 + $0x18] sm:$0xff]
  %v577 = vld [vmem:[%s6 + $0x20] sm:$0xff]
  %v578 = vld [vmem:[%s6 + $0x28] sm:$0xff]
  %v579 = vld [vmem:[%s6 + $0x30] sm:$0xff]
  %v580 = vld [vmem:[%s6 + $0x38] sm:$0xff]
  %v581 = vld [vmem:[%s6 + $0x40] sm:$0xff]
  %v582 = vld [vmem:[%s6 + $0x48] sm:$0xff]
  %v583 = vld [vmem:[%s6 + $0x50] sm:$0xff]
  %v584 = vld [vmem:[%s6 + $0x58] sm:$0xff]
  %v585 = vld [vmem:[%s6 + $0x60] sm:$0xff]
  %v586 = vld [vmem:[%s6 + $0x68] sm:$0xff]
  %v587 = vld [vmem:[%s6 + $0x70] sm:$0xff]
  %v588 = vld [vmem:[%s6 + $0x78] sm:$0xff]
  %v589 = vsel %vm114, %v479, 0.0
  %590 = vadd.xlane.f32.xlu0 %v589
  %v591 = vpop.xlane.xlu0 %590
  %v592 = vsel %vm114, %v484, 0.0
  %593 = vadd.xlane.f32.xlu0 %v592
  %v594 = vpop.xlane.xlu0 %593
  %v595 = vsel %vm114, %v489, 0.0
  %596 = vadd.xlane.f32.xlu0 %v595
  %v597 = vpop.xlane.xlu0 %596
  %v598 = vsel %vm114, %v494, 0.0
  %599 = vadd.xlane.f32.xlu0 %v598
  %v600 = vpop.xlane.xlu0 %599
  %v601 = vsel %vm114, %v499, 0.0
  %602 = vadd.xlane.f32.xlu0 %v601
  %v603 = vpop.xlane.xlu0 %602
  %v604 = vsel %vm114, %v504, 0.0
  %605 = vadd.xlane.f32.xlu0 %v604
  %v606 = vpop.xlane.xlu0 %605
  %v607 = vsel %vm114, %v509, 0.0
  %608 = vadd.xlane.f32.xlu0 %v607
  %v609 = vpop.xlane.xlu0 %608
  %v610 = vsel %vm114, %v514, 0.0
  %611 = vadd.xlane.f32.xlu0 %v610
  %v612 = vpop.xlane.xlu0 %611
  %v613 = vsel %vm114, %v519, 0.0
  %614 = vadd.xlane.f32.xlu0 %v613
  %v615 = vpop.xlane.xlu0 %614
  %v616 = vsel %vm114, %v524, 0.0
  %617 = vadd.xlane.f32.xlu0 %v616
  %v618 = vpop.xlane.xlu0 %617
  %v619 = vsel %vm114, %v529, 0.0
  %620 = vadd.xlane.f32.xlu0 %v619
  %v621 = vpop.xlane.xlu0 %620
  %v622 = vsel %vm114, %v534, 0.0
  %623 = vadd.xlane.f32.xlu0 %v622
  %v624 = vpop.xlane.xlu0 %623
  %v625 = vsel %vm114, %v539, 0.0
  %626 = vadd.xlane.f32.xlu0 %v625
  %v627 = vpop.xlane.xlu0 %626
  %v628 = vsel %vm114, %v544, 0.0
  %629 = vadd.xlane.f32.xlu0 %v628
  %v630 = vpop.xlane.xlu0 %629
  %v631 = vsel %vm114, %v549, 0.0
  %632 = vadd.xlane.f32.xlu0 %v631
  %v633 = vpop.xlane.xlu0 %632
  %v634 = vsel %vm114, %v554, 0.0
  %635 = vadd.xlane.f32.xlu0 %v634
  %v636 = vpop.xlane.xlu0 %635
  %v637 = vmul.f32 %v479, %v479
  %v638 = vmul.f32 %v484, %v484
  %v639 = vmul.f32 %v489, %v489
  %v640 = vmul.f32 %v494, %v494
  %v641 = vmul.f32 %v499, %v499
  %v642 = vmul.f32 %v504, %v504
  %v643 = vmul.f32 %v509, %v509
  %v644 = vmul.f32 %v514, %v514
  %v645 = vmul.f32 %v519, %v519
  %v646 = vmul.f32 %v524, %v524
  %v647 = vmul.f32 %v529, %v529
  %v648 = vmul.f32 %v534, %v534
  %v649 = vmul.f32 %v539, %v539
  %v650 = vmul.f32 %v544, %v544
  %v651 = vmul.f32 %v549, %v549
  %v652 = vmul.f32 %v554, %v554
  %v653 = vsel %vm114, %v637, 0.0
  %654 = vadd.xlane.f32.xlu0 %v653
  %v655 = vpop.xlane.xlu0 %654
  %v656 = vsel %vm114, %v638, 0.0
  %657 = vadd.xlane.f32.xlu0 %v656
  %v658 = vpop.xlane.xlu0 %657
  %v659 = vsel %vm114, %v639, 0.0
  %660 = vadd.xlane.f32.xlu0 %v659
  %v661 = vpop.xlane.xlu0 %660
  %v662 = vsel %vm114, %v640, 0.0
  %663 = vadd.xlane.f32.xlu0 %v662
  %v664 = vpop.xlane.xlu0 %663
  %v665 = vsel %vm114, %v641, 0.0
  %666 = vadd.xlane.f32.xlu0 %v665
  %v667 = vpop.xlane.xlu0 %666
  %v668 = vsel %vm114, %v642, 0.0
  %669 = vadd.xlane.f32.xlu0 %v668
  %v670 = vpop.xlane.xlu0 %669
  %v671 = vsel %vm114, %v643, 0.0
  %672 = vadd.xlane.f32.xlu0 %v671
  %v673 = vpop.xlane.xlu0 %672
  %v674 = vsel %vm114, %v644, 0.0
  %675 = vadd.xlane.f32.xlu0 %v674
  %v676 = vpop.xlane.xlu0 %675
  %v677 = vsel %vm114, %v645, 0.0
  %678 = vadd.xlane.f32.xlu0 %v677
  %v679 = vpop.xlane.xlu0 %678
  %v680 = vsel %vm114, %v646, 0.0
  %681 = vadd.xlane.f32.xlu0 %v680
  %v682 = vpop.xlane.xlu0 %681
  %v683 = vsel %vm114, %v647, 0.0
  %684 = vadd.xlane.f32.xlu0 %v683
  %v685 = vpop.xlane.xlu0 %684
  %v686 = vsel %vm114, %v648, 0.0
  %687 = vadd.xlane.f32.xlu0 %v686
  %v688 = vpop.xlane.xlu0 %687
  %v689 = vsel %vm114, %v649, 0.0
  %690 = vadd.xlane.f32.xlu0 %v689
  %v691 = vpop.xlane.xlu0 %690
  %v692 = vsel %vm114, %v650, 0.0
  %693 = vadd.xlane.f32.xlu0 %v692
  %v694 = vpop.xlane.xlu0 %693
  %v695 = vsel %vm114, %v651, 0.0
  %696 = vadd.xlane.f32.xlu0 %v695
  %v697 = vpop.xlane.xlu0 %696
  %v698 = vsel %vm114, %v652, 0.0
  %699 = vadd.xlane.f32.xlu0 %v698
  %v700 = vpop.xlane.xlu0 %699
  %v701 = vmul.f32 %v591, 0.03125
  %v702 = vmul.f32 %v594, 0.03125
  %v703 = vmul.f32 %v597, 0.03125
  %v704 = vmul.f32 %v600, 0.03125
  %v705 = vmul.f32 %v603, 0.03125
  %v706 = vmul.f32 %v606, 0.03125
  %v707 = vmul.f32 %v609, 0.03125
  %v708 = vmul.f32 %v612, 0.03125
  %v709 = vmul.f32 %v615, 0.03125
  %v710 = vmul.f32 %v618, 0.03125
  %v711 = vmul.f32 %v621, 0.03125
  %v712 = vmul.f32 %v624, 0.03125
  %v713 = vmul.f32 %v627, 0.03125
  %v714 = vmul.f32 %v630, 0.03125
  %v715 = vmul.f32 %v633, 0.03125
  %v716 = vmul.f32 %v636, 0.03125
  %v717 = vmul.f32 %v655, 0.03125
  %v718 = vmul.f32 %v658, 0.03125
  %v719 = vmul.f32 %v661, 0.03125
  %v720 = vmul.f32 %v664, 0.03125
  %v721 = vmul.f32 %v667, 0.03125
  %v722 = vmul.f32 %v670, 0.03125
  %v723 = vmul.f32 %v673, 0.03125
  %v724 = vmul.f32 %v676, 0.03125
  %v725 = vmul.f32 %v679, 0.03125
  %v726 = vmul.f32 %v682, 0.03125
  %v727 = vmul.f32 %v685, 0.03125
  %v728 = vmul.f32 %v688, 0.03125
  %v729 = vmul.f32 %v691, 0.03125
  %v730 = vmul.f32 %v694, 0.03125
  %v731 = vmul.f32 %v697, 0.03125
  %v732 = vmul.f32 %v700, 0.03125
  %v733 = vmul.f32 %v701, %v701
  %v734 = vmul.f32 %v702, %v702
  %v735 = vmul.f32 %v703, %v703
  %v736 = vmul.f32 %v704, %v704
  %v737 = vmul.f32 %v705, %v705
  %v738 = vmul.f32 %v706, %v706
  %v739 = vmul.f32 %v707, %v707
  %v740 = vmul.f32 %v708, %v708
  %v741 = vmul.f32 %v709, %v709
  %v742 = vmul.f32 %v710, %v710
  %v743 = vmul.f32 %v711, %v711
  %v744 = vmul.f32 %v712, %v712
  %v745 = vmul.f32 %v713, %v713
  %v746 = vmul.f32 %v714, %v714
  %v747 = vmul.f32 %v715, %v715
  %v748 = vmul.f32 %v716, %v716
  %v749 = vsub.f32 %v717, %v733
  %v750 = vsub.f32 %v718, %v734
  %v751 = vsub.f32 %v719, %v735
  %v752 = vsub.f32 %v720, %v736
  %v753 = vsub.f32 %v721, %v737
  %v754 = vsub.f32 %v722, %v738
  %v755 = vsub.f32 %v723, %v739
  %v756 = vsub.f32 %v724, %v740
  %v757 = vsub.f32 %v725, %v741
  %v758 = vsub.f32 %v726, %v742
  %v759 = vsub.f32 %v727, %v743
  %v760 = vsub.f32 %v728, %v744
  %v761 = vsub.f32 %v729, %v745
  %v762 = vsub.f32 %v730, %v746
  %v763 = vsub.f32 %v731, %v747
  %v764 = vsub.f32 %v732, %v748
  %v765 = vadd.f32 %v749, 1e-05
  %v766 = vadd.f32 %v750, 1e-05
  %v767 = vadd.f32 %v751, 1e-05
  %v768 = vadd.f32 %v752, 1e-05
  %v769 = vadd.f32 %v753, 1e-05
  %v770 = vadd.f32 %v754, 1e-05
  %v771 = vadd.f32 %v755, 1e-05
  %v772 = vadd.f32 %v756, 1e-05
  %v773 = vadd.f32 %v757, 1e-05
  %v774 = vadd.f32 %v758, 1e-05
  %v775 = vadd.f32 %v759, 1e-05
  %v776 = vadd.f32 %v760, 1e-05
  %v777 = vadd.f32 %v761, 1e-05
  %v778 = vadd.f32 %v762, 1e-05
  %v779 = vadd.f32 %v763, 1e-05
  %v780 = vadd.f32 %v764, 1e-05
  %v781 = vrsqrt.pop %v765
  %v782 = vrsqrt.pop %v766
  %v783 = vrsqrt.pop %v767
  %v784 = vrsqrt.pop %v768
  %v785 = vrsqrt.pop %v769
  %v786 = vrsqrt.pop %v770
  %v787 = vrsqrt.pop %v771
  %v788 = vrsqrt.pop %v772
  %v789 = vrsqrt.pop %v773
  %v790 = vrsqrt.pop %v774
  %v791 = vrsqrt.pop %v775
  %v792 = vrsqrt.pop %v776
  %v793 = vrsqrt.pop %v777
  %v794 = vrsqrt.pop %v778
  %v795 = vrsqrt.pop %v779
  %v796 = vrsqrt.pop %v780
  %v797 = vmul.f32 %v557, %v781
  %v798 = vmul.f32 %v558, %v782
  %v799 = vmul.f32 %v559, %v783
  %v800 = vmul.f32 %v560, %v784
  %v801 = vmul.f32 %v561, %v785
  %v802 = vmul.f32 %v562, %v786
  %v803 = vmul.f32 %v563, %v787
  %v804 = vmul.f32 %v564, %v788
  %v805 = vmul.f32 %v565, %v789
  %v806 = vmul.f32 %v566, %v790
  %v807 = vmul.f32 %v567, %v791
  %v808 = vmul.f32 %v568, %v792
  %v809 = vmul.f32 %v569, %v793
  %v810 = vmul.f32 %v570, %v794
  %v811 = vmul.f32 %v571, %v795
  %v812 = vmul.f32 %v572, %v796
  %v813 = vmul.f32 %v701, %v797
  %v814 = vmul.f32 %v702, %v798
  %v815 = vmul.f32 %v703, %v799
  %v816 = vmul.f32 %v704, %v800
  %v817 = vmul.f32 %v705, %v801
  %v818 = vmul.f32 %v706, %v802
  %v819 = vmul.f32 %v707, %v803
  %v820 = vmul.f32 %v708, %v804
  %v821 = vmul.f32 %v709, %v805
  %v822 = vmul.f32 %v710, %v806
  %v823 = vmul.f32 %v711, %v807
  %v824 = vmul.f32 %v712, %v808
  %v825 = vmul.f32 %v713, %v809
  %v826 = vmul.f32 %v714, %v810
  %v827 = vmul.f32 %v715, %v811
  %v828 = vmul.f32 %v716, %v812
  %v829 = vsub.f32 %v573, %v813
  %v830 = vsub.f32 %v574, %v814
  %v831 = vsub.f32 %v575, %v815
  %v832 = vsub.f32 %v576, %v816
  %v833 = vsub.f32 %v577, %v817
  %v834 = vsub.f32 %v578, %v818
  %v835 = vsub.f32 %v579, %v819
  %v836 = vsub.f32 %v580, %v820
  %v837 = vsub.f32 %v581, %v821
  %v838 = vsub.f32 %v582, %v822
  %v839 = vsub.f32 %v583, %v823
  %v840 = vsub.f32 %v584, %v824
  %v841 = vsub.f32 %v585, %v825
  %v842 = vsub.f32 %v586, %v826
  %v843 = vsub.f32 %v587, %v827
  %v844 = vsub.f32 %v588, %v828
  %846 = vset.pattern.permute.xlu0 0
  %847 = vperm.xlu0 %846, %v797
  %v848 = vpop.permute.xlu0 %847
  %851 = vset.pattern.permute.xlu0 0
  %852 = vperm.xlu0 %851, %v798
  %v853 = vpop.permute.xlu0 %852
  %856 = vset.pattern.permute.xlu0 0
  %857 = vperm.xlu0 %856, %v799
  %v858 = vpop.permute.xlu0 %857
  %861 = vset.pattern.permute.xlu0 0
  %862 = vperm.xlu0 %861, %v800
  %v863 = vpop.permute.xlu0 %862
  %866 = vset.pattern.permute.xlu0 0
  %867 = vperm.xlu0 %866, %v801
  %v868 = vpop.permute.xlu0 %867
  %871 = vset.pattern.permute.xlu0 0
  %872 = vperm.xlu0 %871, %v802
  %v873 = vpop.permute.xlu0 %872
  %876 = vset.pattern.permute.xlu0 0
  %877 = vperm.xlu0 %876, %v803
  %v878 = vpop.permute.xlu0 %877
  %881 = vset.pattern.permute.xlu0 0
  %882 = vperm.xlu0 %881, %v804
  %v883 = vpop.permute.xlu0 %882
  %886 = vset.pattern.permute.xlu0 0
  %887 = vperm.xlu0 %886, %v805
  %v888 = vpop.permute.xlu0 %887
  %891 = vset.pattern.permute.xlu0 0
  %892 = vperm.xlu0 %891, %v806
  %v893 = vpop.permute.xlu0 %892
  %896 = vset.pattern.permute.xlu0 0
  %897 = vperm.xlu0 %896, %v807
  %v898 = vpop.permute.xlu0 %897
  %901 = vset.pattern.permute.xlu0 0
  %902 = vperm.xlu0 %901, %v808
  %v903 = vpop.permute.xlu0 %902
  %906 = vset.pattern.permute.xlu0 0
  %907 = vperm.xlu0 %906, %v809
  %v908 = vpop.permute.xlu0 %907
  %911 = vset.pattern.permute.xlu0 0
  %912 = vperm.xlu0 %911, %v810
  %v913 = vpop.permute.xlu0 %912
  %916 = vset.pattern.permute.xlu0 0
  %917 = vperm.xlu0 %916, %v811
  %v918 = vpop.permute.xlu0 %917
  %921 = vset.pattern.permute.xlu0 0
  %922 = vperm.xlu0 %921, %v812
  %v923 = vpop.permute.xlu0 %922
  %v925 = vmul.f32 %v479, %v848
  %v926 = vmul.f32 %v484, %v853
  %v927 = vmul.f32 %v489, %v858
  %v928 = vmul.f32 %v494, %v863
  %v929 = vmul.f32 %v499, %v868
  %v930 = vmul.f32 %v504, %v873
  %v931 = vmul.f32 %v509, %v878
  %v932 = vmul.f32 %v514, %v883
  %v933 = vmul.f32 %v519, %v888
  %v934 = vmul.f32 %v524, %v893
  %v935 = vmul.f32 %v529, %v898
  %v936 = vmul.f32 %v534, %v903
  %v937 = vmul.f32 %v539, %v908
  %v938 = vmul.f32 %v544, %v913
  %v939 = vmul.f32 %v549, %v918
  %v940 = vmul.f32 %v554, %v923
  %942 = vset.pattern.permute.xlu0 0
  %943 = vperm.xlu0 %942, %v829
  %v944 = vpop.permute.xlu0 %943
  %947 = vset.pattern.permute.xlu0 0
  %948 = vperm.xlu0 %947, %v830
  %v949 = vpop.permute.xlu0 %948
  %952 = vset.pattern.permute.xlu0 0
  %953 = vperm.xlu0 %952, %v831
  %v954 = vpop.permute.xlu0 %953
  %957 = vset.pattern.permute.xlu0 0
  %958 = vperm.xlu0 %957, %v832
  %v959 = vpop.permute.xlu0 %958
  %962 = vset.pattern.permute.xlu0 0
  %963 = vperm.xlu0 %962, %v833
  %v964 = vpop.permute.xlu0 %963
  %967 = vset.pattern.permute.xlu0 0
  %968 = vperm.xlu0 %967, %v834
  %v969 = vpop.permute.xlu0 %968
  %972 = vset.pattern.permute.xlu0 0
  %973 = vperm.xlu0 %972, %v835
  %v974 = vpop.permute.xlu0 %973
  %977 = vset.pattern.permute.xlu0 0
  %978 = vperm.xlu0 %977, %v836
  %v979 = vpop.permute.xlu0 %978
  %982 = vset.pattern.permute.xlu0 0
  %983 = vperm.xlu0 %982, %v837
  %v984 = vpop.permute.xlu0 %983
  %987 = vset.pattern.permute.xlu0 0
  %988 = vperm.xlu0 %987, %v838
  %v989 = vpop.permute.xlu0 %988
  %992 = vset.pattern.permute.xlu0 0
  %993 = vperm.xlu0 %992, %v839
  %v994 = vpop.permute.xlu0 %993
  %997 = vset.pattern.permute.xlu0 0
  %998 = vperm.xlu0 %997, %v840
  %v999 = vpop.permute.xlu0 %998
  %1002 = vset.pattern.permute.xlu0 0
  %1003 = vperm.xlu0 %1002, %v841
  %v1004 = vpop.permute.xlu0 %1003
  %1007 = vset.pattern.permute.xlu0 0
  %1008 = vperm.xlu0 %1007, %v842
  %v1009 = vpop.permute.xlu0 %1008
  %1012 = vset.pattern.permute.xlu0 0
  %1013 = vperm.xlu0 %1012, %v843
  %v1014 = vpop.permute.xlu0 %1013
  %1017 = vset.pattern.permute.xlu0 0
  %1018 = vperm.xlu0 %1017, %v844
  %v1019 = vpop.permute.xlu0 %1018
  %v1021 = vadd.f32 %v925, %v944
  %v1022 = vadd.f32 %v926, %v949
  %v1023 = vadd.f32 %v927, %v954
  %v1024 = vadd.f32 %v928, %v959
  %v1025 = vadd.f32 %v929, %v964
  %v1026 = vadd.f32 %v930, %v969
  %v1027 = vadd.f32 %v931, %v974
  %v1028 = vadd.f32 %v932, %v979
  %v1029 = vadd.f32 %v933, %v984
  %v1030 = vadd.f32 %v934, %v989
  %v1031 = vadd.f32 %v935, %v994
  %v1032 = vadd.f32 %v936, %v999
  %v1033 = vadd.f32 %v937, %v1004
  %v1034 = vadd.f32 %v938, %v1009
  %v1035 = vadd.f32 %v939, %v1014
  %v1036 = vadd.f32 %v940, %v1019
  %v1037 = vmax.f32 %v1021, 0.0
  %v1038 = vmax.f32 %v1022, 0.0
  %v1039 = vmax.f32 %v1023, 0.0
  %v1040 = vmax.f32 %v1024, 0.0
  %v1041 = vmax.f32 %v1025, 0.0
  %v1042 = vmax.f32 %v1026, 0.0
  %v1043 = vmax.f32 %v1027, 0.0
  %v1044 = vmax.f32 %v1028, 0.0
  %v1045 = vmax.f32 %v1029, 0.0
  %v1046 = vmax.f32 %v1030, 0.0
  %v1047 = vmax.f32 %v1031, 0.0
  %v1048 = vmax.f32 %v1032, 0.0
  %v1049 = vmax.f32 %v1033, 0.0
  %v1050 = vmax.f32 %v1034, 0.0
  %v1051 = vmax.f32 %v1035, 0.0
  %v1052 = vmax.f32 %v1036, 0.0
  %v1053 = vld [vmem:[%s7] sm:$0xff]
  %v1054 = vld [vmem:[%s7 + $0x8] sm:$0xff]
  %v1055 = vld [vmem:[%s7 + $0x10] sm:$0xff]
  %v1056 = vld [vmem:[%s7 + $0x18] sm:$0xff]
  %v1057 = vld [vmem:[%s7 + $0x20] sm:$0xff]
  %v1058 = vld [vmem:[%s7 + $0x28] sm:$0xff]
  %v1059 = vld [vmem:[%s7 + $0x30] sm:$0xff]
  %v1060 = vld [vmem:[%s7 + $0x38] sm:$0xff]
  %v1061 = vld [vmem:[%s7 + $0x40] sm:$0xff]
  %v1062 = vld [vmem:[%s7 + $0x48] sm:$0xff]
  %v1063 = vld [vmem:[%s7 + $0x50] sm:$0xff]
  %v1064 = vld [vmem:[%s7 + $0x58] sm:$0xff]
  %v1065 = vld [vmem:[%s7 + $0x60] sm:$0xff]
  %v1066 = vld [vmem:[%s7 + $0x68] sm:$0xff]
  %v1067 = vld [vmem:[%s7 + $0x70] sm:$0xff]
  %v1068 = vld [vmem:[%s7 + $0x78] sm:$0xff]
  %v1069 = vld [vmem:[%s7 + $0x80] sm:$0xff]
  %v1070 = vld [vmem:[%s7 + $0x88] sm:$0xff]
  %v1071 = vld [vmem:[%s7 + $0x90] sm:$0xff]
  %v1072 = vld [vmem:[%s7 + $0x98] sm:$0xff]
  %v1073 = vld [vmem:[%s7 + $0xa0] sm:$0xff]
  %v1074 = vld [vmem:[%s7 + $0xa8] sm:$0xff]
  %v1075 = vld [vmem:[%s7 + $0xb0] sm:$0xff]
  %v1076 = vld [vmem:[%s7 + $0xb8] sm:$0xff]
  %v1077 = vld [vmem:[%s7 + $0xc0] sm:$0xff]
  %v1078 = vld [vmem:[%s7 + $0xc8] sm:$0xff]
  %v1079 = vld [vmem:[%s7 + $0xd0] sm:$0xff]
  %v1080 = vld [vmem:[%s7 + $0xd8] sm:$0xff]
  %v1081 = vld [vmem:[%s7 + $0xe0] sm:$0xff]
  %v1082 = vld [vmem:[%s7 + $0xe8] sm:$0xff]
  %v1083 = vld [vmem:[%s7 + $0xf0] sm:$0xff]
  %v1084 = vld [vmem:[%s7 + $0xf8] sm:$0xff]
  %1085 = vmatprep.subr.mxu0 0.0
  %1086 = vmatpush1.msra.mxu0 %v1037
  %1087 = vmatprep.subr.mxu0 0.0
  %1088 = vmatpush1.msra.mxu0 %v1038
  %1089 = vmatprep.subr.mxu0 0.0
  %1090 = vmatpush1.msra.mxu0 %v1039
  %1091 = vmatprep.subr.mxu0 0.0
  %1092 = vmatpush1.msra.mxu0 %v1040
  %1093 = vmatprep.subr.mxu0 0.0
  %1094 = vmatpush1.msra.mxu0 %v1041
  %1095 = vmatprep.subr.mxu0 0.0
  %1096 = vmatpush1.msra.mxu0 %v1042
  %1097 = vmatprep.subr.mxu0 0.0
  %1098 = vmatpush1.msra.mxu0 %v1043
  %1099 = vmatprep.subr.mxu0 0.0
  %1100 = vmatpush1.msra.mxu0 %v1044
  %1101 = vmatprep.subr.mxu0 0.0
  %1102 = vmatpush1.msra.mxu0 %v1045
  %1103 = vmatprep.subr.mxu0 0.0
  %1104 = vmatpush1.msra.mxu0 %v1046
  %1105 = vmatprep.subr.mxu0 0.0
  %1106 = vmatpush1.msra.mxu0 %v1047
  %1107 = vmatprep.subr.mxu0 0.0
  %1108 = vmatpush1.msra.mxu0 %v1048
  %1109 = vmatprep.subr.mxu0 0.0
  %1110 = vmatpush1.msra.mxu0 %v1049
  %1111 = vmatprep.subr.mxu0 0.0
  %1112 = vmatpush1.msra.mxu0 %v1050
  %1113 = vmatprep.subr.mxu0 0.0
  %1114 = vmatpush1.msra.mxu0 %v1051
  %1115 = vmatprep.subr.mxu0 0.0
  %1116 = vmatpush1.msra.mxu0 %v1052
  %1117 = vmatprep.subr.mxu0 0.0
  %1118 = vmatpush1.msra.mxu0 0.0
  %1119 = vmatprep.subr.mxu0 0.0
  %1120 = vmatpush1.msra.mxu0 0.0
  %1121 = vmatprep.subr.mxu0 0.0
  %1122 = vmatpush1.msra.mxu0 0.0
  %1123 = vmatprep.subr.mxu0 0.0
  %1124 = vmatpush1.msra.mxu0 0.0
  %1125 = vmatprep.subr.mxu0 0.0
  %1126 = vmatpush1.msra.mxu0 0.0
  %1127 = vmatprep.subr.mxu0 0.0
  %1128 = vmatpush1.msra.mxu0 0.0
  %1129 = vmatprep.subr.mxu0 0.0
  %1130 = vmatpush1.msra.mxu0 0.0
  %1131 = vmatprep.subr.mxu0 0.0
  %1132 = vmatpush1.msra.mxu0 0.0
  %1133 = vmatprep.subr.mxu0 0.0
  %1134 = vmatpush1.msra.mxu0 0.0
  %1135 = vmatprep.subr.mxu0 0.0
  %1136 = vmatpush1.msra.mxu0 0.0
  %1137 = vmatprep.subr.mxu0 0.0
  %1138 = vmatpush1.msra.mxu0 0.0
  %1139 = vmatprep.subr.mxu0 0.0
  %1140 = vmatpush1.msra.mxu0 0.0
  %1141 = vmatprep.subr.mxu0 0.0
  %1142 = vmatpush1.msra.mxu0 0.0
  %1143 = vmatprep.subr.mxu0 0.0
  %1144 = vmatpush1.msra.mxu0 0.0
  %1145 = vmatprep.subr.mxu0 0.0
  %1146 = vmatpush1.msra.mxu0 0.0
  %1147 = vmatprep.subr.mxu0 0.0
  %1148 = vmatpush1.msra.mxu0 0.0
  %1149 = vmatprep.mubr.f32.mxu0 0.0
  %1150 = vmatmul.mubr.f32.gmra.mrb[0].mxu0 %v1053
  %v1151 = vpop.f32.mrb[0].mxu0
  %v1152 = vadd.f32 0.0, %v1151
  %v1153 = vpop.f32.mrb[0].mxu0
  %1154 = vmatprep.mubr.f32.mxu0 0.0
  %1155 = vmatmul.mubr.f32.gmra.mrb[0].mxu0 %v1054
  %v1156 = vpop.f32.mrb[0].mxu0
  %v1157 = vadd.f32 0.0, %v1156
  %v1158 = vpop.f32.mrb[0].mxu0
  %1159 = vmatprep.mubr.f32.mxu0 0.0
  %1160 = vmatmul.mubr.f32.gmra.mrb[0].mxu0 %v1055
  %v1161 = vpop.f32.mrb[0].mxu0
  %v1162 = vadd.f32 0.0, %v1161
  %v1163 = vpop.f32.mrb[0].mxu0
  %1164 = vmatprep.mubr.f32.mxu0 0.0
  %1165 = vmatmul.mubr.f32.gmra.mrb[0].mxu0 %v1056
  %v1166 = vpop.f32.mrb[0].mxu0
  %v1167 = vadd.f32 0.0, %v1166
  %v1168 = vpop.f32.mrb[0].mxu0
  %1169 = vmatprep.mubr.f32.mxu0 0.0
  %1170 = vmatmul.mubr.f32.gmra.mrb[0].mxu0 %v1057
  %v1171 = vpop.f32.mrb[0].mxu0
  %v1172 = vadd.f32 0.0, %v1171
  %v1173 = vpop.f32.mrb[0].mxu0
  %1174 = vmatprep.mubr.f32.mxu0 0.0
  %1175 = vmatmul.mubr.f32.gmra.mrb[0].mxu0 %v1058
  %v1176 = vpop.f32.mrb[0].mxu0
  %v1177 = vadd.f32 0.0, %v1176
  %v1178 = vpop.f32.mrb[0].mxu0
  %1179 = vmatprep.mubr.f32.mxu0 0.0
  %1180 = vmatmul.mubr.f32.gmra.mrb[0].mxu0 %v1059
  %v1181 = vpop.f32.mrb[0].mxu0
  %v1182 = vadd.f32 0.0, %v1181
  %v1183 = vpop.f32.mrb[0].mxu0
  %1184 = vmatprep.mubr.f32.mxu0 0.0
  %1185 = vmatmul.mubr.f32.gmra.mrb[0].mxu0 %v1060
  %v1186 = vpop.f32.mrb[0].mxu0
  %v1187 = vadd.f32 0.0, %v1186
  %v1188 = vpop.f32.mrb[0].mxu0
  %1189 = vmatprep.mubr.f32.mxu0 0.0
  %1190 = vmatmul.mubr.f32.gmra.mrb[0].mxu0 %v1061
  %v1191 = vpop.f32.mrb[0].mxu0
  %v1192 = vadd.f32 0.0, %v1191
  %v1193 = vpop.f32.mrb[0].mxu0
  %1194 = vmatprep.mubr.f32.mxu0 0.0
  %1195 = vmatmul.mubr.f32.gmra.mrb[0].mxu0 %v1062
  %v1196 = vpop.f32.mrb[0].mxu0
  %v1197 = vadd.f32 0.0, %v1196
  %v1198 = vpop.f32.mrb[0].mxu0
  %1199 = vmatprep.mubr.f32.mxu0 0.0
  %1200 = vmatmul.mubr.f32.gmra.mrb[0].mxu0 %v1063
  %v1201 = vpop.f32.mrb[0].mxu0
  %v1202 = vadd.f32 0.0, %v1201
  %v1203 = vpop.f32.mrb[0].mxu0
  %1204 = vmatprep.mubr.f32.mxu0 0.0
  %1205 = vmatmul.mubr.f32.gmra.mrb[0].mxu0 %v1064
  %v1206 = vpop.f32.mrb[0].mxu0
  %v1207 = vadd.f32 0.0, %v1206
  %v1208 = vpop.f32.mrb[0].mxu0
  %1209 = vmatprep.mubr.f32.mxu0 0.0
  %1210 = vmatmul.mubr.f32.gmra.mrb[0].mxu0 %v1065
  %v1211 = vpop.f32.mrb[0].mxu0
  %v1212 = vadd.f32 0.0, %v1211
  %v1213 = vpop.f32.mrb[0].mxu0
  %1214 = vmatprep.mubr.f32.mxu0 0.0
  %1215 = vmatmul.mubr.f32.gmra.mrb[0].mxu0 %v1066
  %v1216 = vpop.f32.mrb[0].mxu0
  %v1217 = vadd.f32 0.0, %v1216
  %v1218 = vpop.f32.mrb[0].mxu0
  %1219 = vmatprep.mubr.f32.mxu0 0.0
  %1220 = vmatmul.mubr.f32.gmra.mrb[0].mxu0 %v1067
  %v1221 = vpop.f32.mrb[0].mxu0
  %v1222 = vadd.f32 0.0, %v1221
  %v1223 = vpop.f32.mrb[0].mxu0
  %1224 = vmatprep.mubr.f32.mxu0 0.0
  %1225 = vmatmul.mubr.f32.gmra.mrb[0].mxu0 %v1068
  %v1226 = vpop.f32.mrb[0].mxu0
  %v1227 = vadd.f32 0.0, %v1226
  %v1228 = vpop.f32.mrb[0].mxu0
  %1229 = vmatprep.mubr.f32.mxu0 0.0
  %1230 = vmatmul.mubr.f32.gmra.mrb[0].mxu0 %v1069
  %v1231 = vpop.f32.mrb[0].mxu0
  %v1232 = vadd.f32 0.0, %v1231
  %v1233 = vpop.f32.mrb[0].mxu0
  %1234 = vmatprep.mubr.f32.mxu0 0.0
  %1235 = vmatmul.mubr.f32.gmra.mrb[0].mxu0 %v1070
  %v1236 = vpop.f32.mrb[0].mxu0
  %v1237 = vadd.f32 0.0, %v1236
  %v1238 = vpop.f32.mrb[0].mxu0
  %1239 = vmatprep.mubr.f32.mxu0 0.0
  %1240 = vmatmul.mubr.f32.gmra.mrb[0].mxu0 %v1071
  %v1241 = vpop.f32.mrb[0].mxu0
  %v1242 = vadd.f32 0.0, %v1241
  %v1243 = vpop.f32.mrb[0].mxu0
  %1244 = vmatprep.mubr.f32.mxu0 0.0
  %1245 = vmatmul.mubr.f32.gmra.mrb[0].mxu0 %v1072
  %v1246 = vpop.f32.mrb[0].mxu0
  %v1247 = vadd.f32 0.0, %v1246
  %v1248 = vpop.f32.mrb[0].mxu0
  %1249 = vmatprep.mubr.f32.mxu0 0.0
  %1250 = vmatmul.mubr.f32.gmra.mrb[0].mxu0 %v1073
  %v1251 = vpop.f32.mrb[0].mxu0
  %v1252 = vadd.f32 0.0, %v1251
  %v1253 = vpop.f32.mrb[0].mxu0
  %1254 = vmatprep.mubr.f32.mxu0 0.0
  %1255 = vmatmul.mubr.f32.gmra.mrb[0].mxu0 %v1074
  %v1256 = vpop.f32.mrb[0].mxu0
  %v1257 = vadd.f32 0.0, %v1256
  %v1258 = vpop.f32.mrb[0].mxu0
  %1259 = vmatprep.mubr.f32.mxu0 0.0
  %1260 = vmatmul.mubr.f32.gmra.mrb[0].mxu0 %v1075
  %v1261 = vpop.f32.mrb[0].mxu0
  %v1262 = vadd.f32 0.0, %v1261
  %v1263 = vpop.f32.mrb[0].mxu0
  %1264 = vmatprep.mubr.f32.mxu0 0.0
  %1265 = vmatmul.mubr.f32.gmra.mrb[0].mxu0 %v1076
  %v1266 = vpop.f32.mrb[0].mxu0
  %v1267 = vadd.f32 0.0, %v1266
  %v1268 = vpop.f32.mrb[0].mxu0
  %1269 = vmatprep.mubr.f32.mxu0 0.0
  %1270 = vmatmul.mubr.f32.gmra.mrb[0].mxu0 %v1077
  %v1271 = vpop.f32.mrb[0].mxu0
  %v1272 = vadd.f32 0.0, %v1271
  %v1273 = vpop.f32.mrb[0].mxu0
  %1274 = vmatprep.mubr.f32.mxu0 0.0
  %1275 = vmatmul.mubr.f32.gmra.mrb[0].mxu0 %v1078
  %v1276 = vpop.f32.mrb[0].mxu0
  %v1277 = vadd.f32 0.0, %v1276
  %v1278 = vpop.f32.mrb[0].mxu0
  %1279 = vmatprep.mubr.f32.mxu0 0.0
  %1280 = vmatmul.mubr.f32.gmra.mrb[0].mxu0 %v1079
  %v1281 = vpop.f32.mrb[0].mxu0
  %v1282 = vadd.f32 0.0, %v1281
  %v1283 = vpop.f32.mrb[0].mxu0
  %1284 = vmatprep.mubr.f32.mxu0 0.0
  %1285 = vmatmul.mubr.f32.gmra.mrb[0].mxu0 %v1080
  %v1286 = vpop.f32.mrb[0].mxu0
  %v1287 = vadd.f32 0.0, %v1286
  %v1288 = vpop.f32.mrb[0].mxu0
  %1289 = vmatprep.mubr.f32.mxu0 0.0
  %1290 = vmatmul.mubr.f32.gmra.mrb[0].mxu0 %v1081
  %v1291 = vpop.f32.mrb[0].mxu0
  %v1292 = vadd.f32 0.0, %v1291
  %v1293 = vpop.f32.mrb[0].mxu0
  %1294 = vmatprep.mubr.f32.mxu0 0.0
  %1295 = vmatmul.mubr.f32.gmra.mrb[0].mxu0 %v1082
  %v1296 = vpop.f32.mrb[0].mxu0
  %v1297 = vadd.f32 0.0, %v1296
  %v1298 = vpop.f32.mrb[0].mxu0
  %1299 = vmatprep.mubr.f32.mxu0 0.0
  %1300 = vmatmul.mubr.f32.gmra.mrb[0].mxu0 %v1083
  %v1301 = vpop.f32.mrb[0].mxu0
  %v1302 = vadd.f32 0.0, %v1301
  %v1303 = vpop.f32.mrb[0].mxu0
  %1304 = vmatprep.mubr.f32.mxu0 0.0
  %1305 = vmatmul.mubr.f32.gmra.mrb[0].mxu0 %v1084
  %v1306 = vpop.f32.mrb[0].mxu0
  %v1307 = vadd.f32 0.0, %v1306
  %v1308 = vpop.f32.mrb[0].mxu0
  %1309 = vdwg.mxu0
  %v1310 = vld [vmem:[%s8] sm:$0xff]
  %v1311 = vld [vmem:[%s8 + $0x8] sm:$0xff]
  %v1312 = vld [vmem:[%s8 + $0x10] sm:$0xff]
  %v1313 = vld [vmem:[%s8 + $0x18] sm:$0xff]
  %v1314 = vld [vmem:[%s8 + $0x20] sm:$0xff]
  %v1315 = vld [vmem:[%s8 + $0x28] sm:$0xff]
  %v1316 = vld [vmem:[%s8 + $0x30] sm:$0xff]
  %v1317 = vld [vmem:[%s8 + $0x38] sm:$0xff]
  %v1318 = vld [vmem:[%s8 + $0x40] sm:$0xff]
  %v1319 = vld [vmem:[%s8 + $0x48] sm:$0xff]
  %v1320 = vld [vmem:[%s8 + $0x50] sm:$0xff]
  %v1321 = vld [vmem:[%s8 + $0x58] sm:$0xff]
  %v1322 = vld [vmem:[%s8 + $0x60] sm:$0xff]
  %v1323 = vld [vmem:[%s8 + $0x68] sm:$0xff]
  %v1324 = vld [vmem:[%s8 + $0x70] sm:$0xff]
  %v1325 = vld [vmem:[%s8 + $0x78] sm:$0xff]
  %v1326 = vld [vmem:[%s8 + $0x80] sm:$0xff]
  %v1327 = vld [vmem:[%s8 + $0x88] sm:$0xff]
  %v1328 = vld [vmem:[%s8 + $0x90] sm:$0xff]
  %v1329 = vld [vmem:[%s8 + $0x98] sm:$0xff]
  %v1330 = vld [vmem:[%s8 + $0xa0] sm:$0xff]
  %v1331 = vld [vmem:[%s8 + $0xa8] sm:$0xff]
  %v1332 = vld [vmem:[%s8 + $0xb0] sm:$0xff]
  %v1333 = vld [vmem:[%s8 + $0xb8] sm:$0xff]
  %v1334 = vld [vmem:[%s8 + $0xc0] sm:$0xff]
  %v1335 = vld [vmem:[%s8 + $0xc8] sm:$0xff]
  %v1336 = vld [vmem:[%s8 + $0xd0] sm:$0xff]
  %v1337 = vld [vmem:[%s8 + $0xd8] sm:$0xff]
  %v1338 = vld [vmem:[%s8 + $0xe0] sm:$0xff]
  %v1339 = vld [vmem:[%s8 + $0xe8] sm:$0xff]
  %v1340 = vld [vmem:[%s8 + $0xf0] sm:$0xff]
  %v1341 = vld [vmem:[%s8 + $0xf8] sm:$0xff]
  %v1342 = vld [vmem:[%s9] sm:$0xff]
  %v1343 = vld [vmem:[%s9 + $0x8] sm:$0xff]
  %v1344 = vld [vmem:[%s9 + $0x10] sm:$0xff]
  %v1345 = vld [vmem:[%s9 + $0x18] sm:$0xff]
  %v1346 = vld [vmem:[%s9 + $0x20] sm:$0xff]
  %v1347 = vld [vmem:[%s9 + $0x28] sm:$0xff]
  %v1348 = vld [vmem:[%s9 + $0x30] sm:$0xff]
  %v1349 = vld [vmem:[%s9 + $0x38] sm:$0xff]
  %v1350 = vld [vmem:[%s9 + $0x40] sm:$0xff]
  %v1351 = vld [vmem:[%s9 + $0x48] sm:$0xff]
  %v1352 = vld [vmem:[%s9 + $0x50] sm:$0xff]
  %v1353 = vld [vmem:[%s9 + $0x58] sm:$0xff]
  %v1354 = vld [vmem:[%s9 + $0x60] sm:$0xff]
  %v1355 = vld [vmem:[%s9 + $0x68] sm:$0xff]
  %v1356 = vld [vmem:[%s9 + $0x70] sm:$0xff]
  %v1357 = vld [vmem:[%s9 + $0x78] sm:$0xff]
  %v1358 = vld [vmem:[%s9 + $0x80] sm:$0xff]
  %v1359 = vld [vmem:[%s9 + $0x88] sm:$0xff]
  %v1360 = vld [vmem:[%s9 + $0x90] sm:$0xff]
  %v1361 = vld [vmem:[%s9 + $0x98] sm:$0xff]
  %v1362 = vld [vmem:[%s9 + $0xa0] sm:$0xff]
  %v1363 = vld [vmem:[%s9 + $0xa8] sm:$0xff]
  %v1364 = vld [vmem:[%s9 + $0xb0] sm:$0xff]
  %v1365 = vld [vmem:[%s9 + $0xb8] sm:$0xff]
  %v1366 = vld [vmem:[%s9 + $0xc0] sm:$0xff]
  %v1367 = vld [vmem:[%s9 + $0xc8] sm:$0xff]
  %v1368 = vld [vmem:[%s9 + $0xd0] sm:$0xff]
  %v1369 = vld [vmem:[%s9 + $0xd8] sm:$0xff]
  %v1370 = vld [vmem:[%s9 + $0xe0] sm:$0xff]
  %v1371 = vld [vmem:[%s9 + $0xe8] sm:$0xff]
  %v1372 = vld [vmem:[%s9 + $0xf0] sm:$0xff]
  %v1373 = vld [vmem:[%s9 + $0xf8] sm:$0xff]
  %v1374 = vsel %vm114, %v1152, 0.0
  %1375 = vadd.xlane.f32.xlu0 %v1374
  %v1376 = vpop.xlane.xlu0 %1375
  %v1377 = vsel %vm114, %v1157, 0.0
  %1378 = vadd.xlane.f32.xlu0 %v1377
  %v1379 = vpop.xlane.xlu0 %1378
  %v1380 = vsel %vm114, %v1162, 0.0
  %1381 = vadd.xlane.f32.xlu0 %v1380
  %v1382 = vpop.xlane.xlu0 %1381
  %v1383 = vsel %vm114, %v1167, 0.0
  %1384 = vadd.xlane.f32.xlu0 %v1383
  %v1385 = vpop.xlane.xlu0 %1384
  %v1386 = vsel %vm114, %v1172, 0.0
  %1387 = vadd.xlane.f32.xlu0 %v1386
  %v1388 = vpop.xlane.xlu0 %1387
  %v1389 = vsel %vm114, %v1177, 0.0
  %1390 = vadd.xlane.f32.xlu0 %v1389
  %v1391 = vpop.xlane.xlu0 %1390
  %v1392 = vsel %vm114, %v1182, 0.0
  %1393 = vadd.xlane.f32.xlu0 %v1392
  %v1394 = vpop.xlane.xlu0 %1393
  %v1395 = vsel %vm114, %v1187, 0.0
  %1396 = vadd.xlane.f32.xlu0 %v1395
  %v1397 = vpop.xlane.xlu0 %1396
  %v1398 = vsel %vm114, %v1192, 0.0
  %1399 = vadd.xlane.f32.xlu0 %v1398
  %v1400 = vpop.xlane.xlu0 %1399
  %v1401 = vsel %vm114, %v1197, 0.0
  %1402 = vadd.xlane.f32.xlu0 %v1401
  %v1403 = vpop.xlane.xlu0 %1402
  %v1404 = vsel %vm114, %v1202, 0.0
  %1405 = vadd.xlane.f32.xlu0 %v1404
  %v1406 = vpop.xlane.xlu0 %1405
  %v1407 = vsel %vm114, %v1207, 0.0
  %1408 = vadd.xlane.f32.xlu0 %v1407
  %v1409 = vpop.xlane.xlu0 %1408
  %v1410 = vsel %vm114, %v1212, 0.0
  %1411 = vadd.xlane.f32.xlu0 %v1410
  %v1412 = vpop.xlane.xlu0 %1411
  %v1413 = vsel %vm114, %v1217, 0.0
  %1414 = vadd.xlane.f32.xlu0 %v1413
  %v1415 = vpop.xlane.xlu0 %1414
  %v1416 = vsel %vm114, %v1222, 0.0
  %1417 = vadd.xlane.f32.xlu0 %v1416
  %v1418 = vpop.xlane.xlu0 %1417
  %v1419 = vsel %vm114, %v1227, 0.0
  %1420 = vadd.xlane.f32.xlu0 %v1419
  %v1421 = vpop.xlane.xlu0 %1420
  %v1422 = vsel %vm114, %v1232, 0.0
  %1423 = vadd.xlane.f32.xlu0 %v1422
  %v1424 = vpop.xlane.xlu0 %1423
  %v1425 = vsel %vm114, %v1237, 0.0
  %1426 = vadd.xlane.f32.xlu0 %v1425
  %v1427 = vpop.xlane.xlu0 %1426
  %v1428 = vsel %vm114, %v1242, 0.0
  %1429 = vadd.xlane.f32.xlu0 %v1428
  %v1430 = vpop.xlane.xlu0 %1429
  %v1431 = vsel %vm114, %v1247, 0.0
  %1432 = vadd.xlane.f32.xlu0 %v1431
  %v1433 = vpop.xlane.xlu0 %1432
  %v1434 = vsel %vm114, %v1252, 0.0
  %1435 = vadd.xlane.f32.xlu0 %v1434
  %v1436 = vpop.xlane.xlu0 %1435
  %v1437 = vsel %vm114, %v1257, 0.0
  %1438 = vadd.xlane.f32.xlu0 %v1437
  %v1439 = vpop.xlane.xlu0 %1438
  %v1440 = vsel %vm114, %v1262, 0.0
  %1441 = vadd.xlane.f32.xlu0 %v1440
  %v1442 = vpop.xlane.xlu0 %1441
  %v1443 = vsel %vm114, %v1267, 0.0
  %1444 = vadd.xlane.f32.xlu0 %v1443
  %v1445 = vpop.xlane.xlu0 %1444
  %v1446 = vsel %vm114, %v1272, 0.0
  %1447 = vadd.xlane.f32.xlu0 %v1446
  %v1448 = vpop.xlane.xlu0 %1447
  %v1449 = vsel %vm114, %v1277, 0.0
  %1450 = vadd.xlane.f32.xlu0 %v1449
  %v1451 = vpop.xlane.xlu0 %1450
  %v1452 = vsel %vm114, %v1282, 0.0
  %1453 = vadd.xlane.f32.xlu0 %v1452
  %v1454 = vpop.xlane.xlu0 %1453
  %v1455 = vsel %vm114, %v1287, 0.0
  %1456 = vadd.xlane.f32.xlu0 %v1455
  %v1457 = vpop.xlane.xlu0 %1456
  %v1458 = vsel %vm114, %v1292, 0.0
  %1459 = vadd.xlane.f32.xlu0 %v1458
  %v1460 = vpop.xlane.xlu0 %1459
  %v1461 = vsel %vm114, %v1297, 0.0
  %1462 = vadd.xlane.f32.xlu0 %v1461
  %v1463 = vpop.xlane.xlu0 %1462
  %v1464 = vsel %vm114, %v1302, 0.0
  %1465 = vadd.xlane.f32.xlu0 %v1464
  %v1466 = vpop.xlane.xlu0 %1465
  %v1467 = vsel %vm114, %v1307, 0.0
  %1468 = vadd.xlane.f32.xlu0 %v1467
  %v1469 = vpop.xlane.xlu0 %1468
  %v1470 = vmul.f32 %v1152, %v1152
  %v1471 = vmul.f32 %v1157, %v1157
  %v1472 = vmul.f32 %v1162, %v1162
  %v1473 = vmul.f32 %v1167, %v1167
  %v1474 = vmul.f32 %v1172, %v1172
  %v1475 = vmul.f32 %v1177, %v1177
  %v1476 = vmul.f32 %v1182, %v1182
  %v1477 = vmul.f32 %v1187, %v1187
  %v1478 = vmul.f32 %v1192, %v1192
  %v1479 = vmul.f32 %v1197, %v1197
  %v1480 = vmul.f32 %v1202, %v1202
  %v1481 = vmul.f32 %v1207, %v1207
  %v1482 = vmul.f32 %v1212, %v1212
  %v1483 = vmul.f32 %v1217, %v1217
  %v1484 = vmul.f32 %v1222, %v1222
  %v1485 = vmul.f32 %v1227, %v1227
  %v1486 = vmul.f32 %v1232, %v1232
  %v1487 = vmul.f32 %v1237, %v1237
  %v1488 = vmul.f32 %v1242, %v1242
  %v1489 = vmul.f32 %v1247, %v1247
  %v1490 = vmul.f32 %v1252, %v1252
  %v1491 = vmul.f32 %v1257, %v1257
  %v1492 = vmul.f32 %v1262, %v1262
  %v1493 = vmul.f32 %v1267, %v1267
  %v1494 = vmul.f32 %v1272, %v1272
  %v1495 = vmul.f32 %v1277, %v1277
  %v1496 = vmul.f32 %v1282, %v1282
  %v1497 = vmul.f32 %v1287, %v1287
  %v1498 = vmul.f32 %v1292, %v1292
  %v1499 = vmul.f32 %v1297, %v1297
  %v1500 = vmul.f32 %v1302, %v1302
  %v1501 = vmul.f32 %v1307, %v1307
  %v1502 = vsel %vm114, %v1470, 0.0
  %1503 = vadd.xlane.f32.xlu0 %v1502
  %v1504 = vpop.xlane.xlu0 %1503
  %v1505 = vsel %vm114, %v1471, 0.0
  %1506 = vadd.xlane.f32.xlu0 %v1505
  %v1507 = vpop.xlane.xlu0 %1506
  %v1508 = vsel %vm114, %v1472, 0.0
  %1509 = vadd.xlane.f32.xlu0 %v1508
  %v1510 = vpop.xlane.xlu0 %1509
  %v1511 = vsel %vm114, %v1473, 0.0
  %1512 = vadd.xlane.f32.xlu0 %v1511
  %v1513 = vpop.xlane.xlu0 %1512
  %v1514 = vsel %vm114, %v1474, 0.0
  %1515 = vadd.xlane.f32.xlu0 %v1514
  %v1516 = vpop.xlane.xlu0 %1515
  %v1517 = vsel %vm114, %v1475, 0.0
  %1518 = vadd.xlane.f32.xlu0 %v1517
  %v1519 = vpop.xlane.xlu0 %1518
  %v1520 = vsel %vm114, %v1476, 0.0
  %1521 = vadd.xlane.f32.xlu0 %v1520
  %v1522 = vpop.xlane.xlu0 %1521
  %v1523 = vsel %vm114, %v1477, 0.0
  %1524 = vadd.xlane.f32.xlu0 %v1523
  %v1525 = vpop.xlane.xlu0 %1524
  %v1526 = vsel %vm114, %v1478, 0.0
  %1527 = vadd.xlane.f32.xlu0 %v1526
  %v1528 = vpop.xlane.xlu0 %1527
  %v1529 = vsel %vm114, %v1479, 0.0
  %1530 = vadd.xlane.f32.xlu0 %v1529
  %v1531 = vpop.xlane.xlu0 %1530
  %v1532 = vsel %vm114, %v1480, 0.0
  %1533 = vadd.xlane.f32.xlu0 %v1532
  %v1534 = vpop.xlane.xlu0 %1533
  %v1535 = vsel %vm114, %v1481, 0.0
  %1536 = vadd.xlane.f32.xlu0 %v1535
  %v1537 = vpop.xlane.xlu0 %1536
  %v1538 = vsel %vm114, %v1482, 0.0
  %1539 = vadd.xlane.f32.xlu0 %v1538
  %v1540 = vpop.xlane.xlu0 %1539
  %v1541 = vsel %vm114, %v1483, 0.0
  %1542 = vadd.xlane.f32.xlu0 %v1541
  %v1543 = vpop.xlane.xlu0 %1542
  %v1544 = vsel %vm114, %v1484, 0.0
  %1545 = vadd.xlane.f32.xlu0 %v1544
  %v1546 = vpop.xlane.xlu0 %1545
  %v1547 = vsel %vm114, %v1485, 0.0
  %1548 = vadd.xlane.f32.xlu0 %v1547
  %v1549 = vpop.xlane.xlu0 %1548
  %v1550 = vsel %vm114, %v1486, 0.0
  %1551 = vadd.xlane.f32.xlu0 %v1550
  %v1552 = vpop.xlane.xlu0 %1551
  %v1553 = vsel %vm114, %v1487, 0.0
  %1554 = vadd.xlane.f32.xlu0 %v1553
  %v1555 = vpop.xlane.xlu0 %1554
  %v1556 = vsel %vm114, %v1488, 0.0
  %1557 = vadd.xlane.f32.xlu0 %v1556
  %v1558 = vpop.xlane.xlu0 %1557
  %v1559 = vsel %vm114, %v1489, 0.0
  %1560 = vadd.xlane.f32.xlu0 %v1559
  %v1561 = vpop.xlane.xlu0 %1560
  %v1562 = vsel %vm114, %v1490, 0.0
  %1563 = vadd.xlane.f32.xlu0 %v1562
  %v1564 = vpop.xlane.xlu0 %1563
  %v1565 = vsel %vm114, %v1491, 0.0
  %1566 = vadd.xlane.f32.xlu0 %v1565
  %v1567 = vpop.xlane.xlu0 %1566
  %v1568 = vsel %vm114, %v1492, 0.0
  %1569 = vadd.xlane.f32.xlu0 %v1568
  %v1570 = vpop.xlane.xlu0 %1569
  %v1571 = vsel %vm114, %v1493, 0.0
  %1572 = vadd.xlane.f32.xlu0 %v1571
  %v1573 = vpop.xlane.xlu0 %1572
  %v1574 = vsel %vm114, %v1494, 0.0
  %1575 = vadd.xlane.f32.xlu0 %v1574
  %v1576 = vpop.xlane.xlu0 %1575
  %v1577 = vsel %vm114, %v1495, 0.0
  %1578 = vadd.xlane.f32.xlu0 %v1577
  %v1579 = vpop.xlane.xlu0 %1578
  %v1580 = vsel %vm114, %v1496, 0.0
  %1581 = vadd.xlane.f32.xlu0 %v1580
  %v1582 = vpop.xlane.xlu0 %1581
  %v1583 = vsel %vm114, %v1497, 0.0
  %1584 = vadd.xlane.f32.xlu0 %v1583
  %v1585 = vpop.xlane.xlu0 %1584
  %v1586 = vsel %vm114, %v1498, 0.0
  %1587 = vadd.xlane.f32.xlu0 %v1586
  %v1588 = vpop.xlane.xlu0 %1587
  %v1589 = vsel %vm114, %v1499, 0.0
  %1590 = vadd.xlane.f32.xlu0 %v1589
  %v1591 = vpop.xlane.xlu0 %1590
  %v1592 = vsel %vm114, %v1500, 0.0
  %1593 = vadd.xlane.f32.xlu0 %v1592
  %v1594 = vpop.xlane.xlu0 %1593
  %v1595 = vsel %vm114, %v1501, 0.0
  %1596 = vadd.xlane.f32.xlu0 %v1595
  %v1597 = vpop.xlane.xlu0 %1596
  %v1598 = vmul.f32 %v1376, 0.03125
  %v1599 = vmul.f32 %v1379, 0.03125
  %v1600 = vmul.f32 %v1382, 0.03125
  %v1601 = vmul.f32 %v1385, 0.03125
  %v1602 = vmul.f32 %v1388, 0.03125
  %v1603 = vmul.f32 %v1391, 0.03125
  %v1604 = vmul.f32 %v1394, 0.03125
  %v1605 = vmul.f32 %v1397, 0.03125
  %v1606 = vmul.f32 %v1400, 0.03125
  %v1607 = vmul.f32 %v1403, 0.03125
  %v1608 = vmul.f32 %v1406, 0.03125
  %v1609 = vmul.f32 %v1409, 0.03125
  %v1610 = vmul.f32 %v1412, 0.03125
  %v1611 = vmul.f32 %v1415, 0.03125
  %v1612 = vmul.f32 %v1418, 0.03125
  %v1613 = vmul.f32 %v1421, 0.03125
  %v1614 = vmul.f32 %v1424, 0.03125
  %v1615 = vmul.f32 %v1427, 0.03125
  %v1616 = vmul.f32 %v1430, 0.03125
  %v1617 = vmul.f32 %v1433, 0.03125
  %v1618 = vmul.f32 %v1436, 0.03125
  %v1619 = vmul.f32 %v1439, 0.03125
  %v1620 = vmul.f32 %v1442, 0.03125
  %v1621 = vmul.f32 %v1445, 0.03125
  %v1622 = vmul.f32 %v1448, 0.03125
  %v1623 = vmul.f32 %v1451, 0.03125
  %v1624 = vmul.f32 %v1454, 0.03125
  %v1625 = vmul.f32 %v1457, 0.03125
  %v1626 = vmul.f32 %v1460, 0.03125
  %v1627 = vmul.f32 %v1463, 0.03125
  %v1628 = vmul.f32 %v1466, 0.03125
  %v1629 = vmul.f32 %v1469, 0.03125
  %v1630 = vmul.f32 %v1504, 0.03125
  %v1631 = vmul.f32 %v1507, 0.03125
  %v1632 = vmul.f32 %v1510, 0.03125
  %v1633 = vmul.f32 %v1513, 0.03125
  %v1634 = vmul.f32 %v1516, 0.03125
  %v1635 = vmul.f32 %v1519, 0.03125
  %v1636 = vmul.f32 %v1522, 0.03125
  %v1637 = vmul.f32 %v1525, 0.03125
  %v1638 = vmul.f32 %v1528, 0.03125
  %v1639 = vmul.f32 %v1531, 0.03125
  %v1640 = vmul.f32 %v1534, 0.03125
  %v1641 = vmul.f32 %v1537, 0.03125
  %v1642 = vmul.f32 %v1540, 0.03125
  %v1643 = vmul.f32 %v1543, 0.03125
  %v1644 = vmul.f32 %v1546, 0.03125
  %v1645 = vmul.f32 %v1549, 0.03125
  %v1646 = vmul.f32 %v1552, 0.03125
  %v1647 = vmul.f32 %v1555, 0.03125
  %v1648 = vmul.f32 %v1558, 0.03125
  %v1649 = vmul.f32 %v1561, 0.03125
  %v1650 = vmul.f32 %v1564, 0.03125
  %v1651 = vmul.f32 %v1567, 0.03125
  %v1652 = vmul.f32 %v1570, 0.03125
  %v1653 = vmul.f32 %v1573, 0.03125
  %v1654 = vmul.f32 %v1576, 0.03125
  %v1655 = vmul.f32 %v1579, 0.03125
  %v1656 = vmul.f32 %v1582, 0.03125
  %v1657 = vmul.f32 %v1585, 0.03125
  %v1658 = vmul.f32 %v1588, 0.03125
  %v1659 = vmul.f32 %v1591, 0.03125
  %v1660 = vmul.f32 %v1594, 0.03125
  %v1661 = vmul.f32 %v1597, 0.03125
  %v1662 = vmul.f32 %v1598, %v1598
  %v1663 = vmul.f32 %v1599, %v1599
  %v1664 = vmul.f32 %v1600, %v1600
  %v1665 = vmul.f32 %v1601, %v1601
  %v1666 = vmul.f32 %v1602, %v1602
  %v1667 = vmul.f32 %v1603, %v1603
  %v1668 = vmul.f32 %v1604, %v1604
  %v1669 = vmul.f32 %v1605, %v1605
  %v1670 = vmul.f32 %v1606, %v1606
  %v1671 = vmul.f32 %v1607, %v1607
  %v1672 = vmul.f32 %v1608, %v1608
  %v1673 = vmul.f32 %v1609, %v1609
  %v1674 = vmul.f32 %v1610, %v1610
  %v1675 = vmul.f32 %v1611, %v1611
  %v1676 = vmul.f32 %v1612, %v1612
  %v1677 = vmul.f32 %v1613, %v1613
  %v1678 = vmul.f32 %v1614, %v1614
  %v1679 = vmul.f32 %v1615, %v1615
  %v1680 = vmul.f32 %v1616, %v1616
  %v1681 = vmul.f32 %v1617, %v1617
  %v1682 = vmul.f32 %v1618, %v1618
  %v1683 = vmul.f32 %v1619, %v1619
  %v1684 = vmul.f32 %v1620, %v1620
  %v1685 = vmul.f32 %v1621, %v1621
  %v1686 = vmul.f32 %v1622, %v1622
  %v1687 = vmul.f32 %v1623, %v1623
  %v1688 = vmul.f32 %v1624, %v1624
  %v1689 = vmul.f32 %v1625, %v1625
  %v1690 = vmul.f32 %v1626, %v1626
  %v1691 = vmul.f32 %v1627, %v1627
  %v1692 = vmul.f32 %v1628, %v1628
  %v1693 = vmul.f32 %v1629, %v1629
  %v1694 = vsub.f32 %v1630, %v1662
  %v1695 = vsub.f32 %v1631, %v1663
  %v1696 = vsub.f32 %v1632, %v1664
  %v1697 = vsub.f32 %v1633, %v1665
  %v1698 = vsub.f32 %v1634, %v1666
  %v1699 = vsub.f32 %v1635, %v1667
  %v1700 = vsub.f32 %v1636, %v1668
  %v1701 = vsub.f32 %v1637, %v1669
  %v1702 = vsub.f32 %v1638, %v1670
  %v1703 = vsub.f32 %v1639, %v1671
  %v1704 = vsub.f32 %v1640, %v1672
  %v1705 = vsub.f32 %v1641, %v1673
  %v1706 = vsub.f32 %v1642, %v1674
  %v1707 = vsub.f32 %v1643, %v1675
  %v1708 = vsub.f32 %v1644, %v1676
  %v1709 = vsub.f32 %v1645, %v1677
  %v1710 = vsub.f32 %v1646, %v1678
  %v1711 = vsub.f32 %v1647, %v1679
  %v1712 = vsub.f32 %v1648, %v1680
  %v1713 = vsub.f32 %v1649, %v1681
  %v1714 = vsub.f32 %v1650, %v1682
  %v1715 = vsub.f32 %v1651, %v1683
  %v1716 = vsub.f32 %v1652, %v1684
  %v1717 = vsub.f32 %v1653, %v1685
  %v1718 = vsub.f32 %v1654, %v1686
  %v1719 = vsub.f32 %v1655, %v1687
  %v1720 = vsub.f32 %v1656, %v1688
  %v1721 = vsub.f32 %v1657, %v1689
  %v1722 = vsub.f32 %v1658, %v1690
  %v1723 = vsub.f32 %v1659, %v1691
  %v1724 = vsub.f32 %v1660, %v1692
  %v1725 = vsub.f32 %v1661, %v1693
  %v1726 = vadd.f32 %v1694, 1e-05
  %v1727 = vadd.f32 %v1695, 1e-05
  %v1728 = vadd.f32 %v1696, 1e-05
  %v1729 = vadd.f32 %v1697, 1e-05
  %v1730 = vadd.f32 %v1698, 1e-05
  %v1731 = vadd.f32 %v1699, 1e-05
  %v1732 = vadd.f32 %v1700, 1e-05
  %v1733 = vadd.f32 %v1701, 1e-05
  %v1734 = vadd.f32 %v1702, 1e-05
  %v1735 = vadd.f32 %v1703, 1e-05
  %v1736 = vadd.f32 %v1704, 1e-05
  %v1737 = vadd.f32 %v1705, 1e-05
  %v1738 = vadd.f32 %v1706, 1e-05
  %v1739 = vadd.f32 %v1707, 1e-05
  %v1740 = vadd.f32 %v1708, 1e-05
  %v1741 = vadd.f32 %v1709, 1e-05
  %v1742 = vadd.f32 %v1710, 1e-05
  %v1743 = vadd.f32 %v1711, 1e-05
  %v1744 = vadd.f32 %v1712, 1e-05
  %v1745 = vadd.f32 %v1713, 1e-05
  %v1746 = vadd.f32 %v1714, 1e-05
  %v1747 = vadd.f32 %v1715, 1e-05
  %v1748 = vadd.f32 %v1716, 1e-05
  %v1749 = vadd.f32 %v1717, 1e-05
  %v1750 = vadd.f32 %v1718, 1e-05
  %v1751 = vadd.f32 %v1719, 1e-05
  %v1752 = vadd.f32 %v1720, 1e-05
  %v1753 = vadd.f32 %v1721, 1e-05
  %v1754 = vadd.f32 %v1722, 1e-05
  %v1755 = vadd.f32 %v1723, 1e-05
  %v1756 = vadd.f32 %v1724, 1e-05
  %v1757 = vadd.f32 %v1725, 1e-05
  %v1758 = vrsqrt.pop %v1726
  %v1759 = vrsqrt.pop %v1727
  %v1760 = vrsqrt.pop %v1728
  %v1761 = vrsqrt.pop %v1729
  %v1762 = vrsqrt.pop %v1730
  %v1763 = vrsqrt.pop %v1731
  %v1764 = vrsqrt.pop %v1732
  %v1765 = vrsqrt.pop %v1733
  %v1766 = vrsqrt.pop %v1734
  %v1767 = vrsqrt.pop %v1735
  %v1768 = vrsqrt.pop %v1736
  %v1769 = vrsqrt.pop %v1737
  %v1770 = vrsqrt.pop %v1738
  %v1771 = vrsqrt.pop %v1739
  %v1772 = vrsqrt.pop %v1740
  %v1773 = vrsqrt.pop %v1741
  %v1774 = vrsqrt.pop %v1742
  %v1775 = vrsqrt.pop %v1743
  %v1776 = vrsqrt.pop %v1744
  %v1777 = vrsqrt.pop %v1745
  %v1778 = vrsqrt.pop %v1746
  %v1779 = vrsqrt.pop %v1747
  %v1780 = vrsqrt.pop %v1748
  %v1781 = vrsqrt.pop %v1749
  %v1782 = vrsqrt.pop %v1750
  %v1783 = vrsqrt.pop %v1751
  %v1784 = vrsqrt.pop %v1752
  %v1785 = vrsqrt.pop %v1753
  %v1786 = vrsqrt.pop %v1754
  %v1787 = vrsqrt.pop %v1755
  %v1788 = vrsqrt.pop %v1756
  %v1789 = vrsqrt.pop %v1757
  %v1790 = vmul.f32 %v1310, %v1758
  %v1791 = vmul.f32 %v1311, %v1759
  %v1792 = vmul.f32 %v1312, %v1760
  %v1793 = vmul.f32 %v1313, %v1761
  %v1794 = vmul.f32 %v1314, %v1762
  %v1795 = vmul.f32 %v1315, %v1763
  %v1796 = vmul.f32 %v1316, %v1764
  %v1797 = vmul.f32 %v1317, %v1765
  %v1798 = vmul.f32 %v1318, %v1766
  %v1799 = vmul.f32 %v1319, %v1767
  %v1800 = vmul.f32 %v1320, %v1768
  %v1801 = vmul.f32 %v1321, %v1769
  %v1802 = vmul.f32 %v1322, %v1770
  %v1803 = vmul.f32 %v1323, %v1771
  %v1804 = vmul.f32 %v1324, %v1772
  %v1805 = vmul.f32 %v1325, %v1773
  %v1806 = vmul.f32 %v1326, %v1774
  %v1807 = vmul.f32 %v1327, %v1775
  %v1808 = vmul.f32 %v1328, %v1776
  %v1809 = vmul.f32 %v1329, %v1777
  %v1810 = vmul.f32 %v1330, %v1778
  %v1811 = vmul.f32 %v1331, %v1779
  %v1812 = vmul.f32 %v1332, %v1780
  %v1813 = vmul.f32 %v1333, %v1781
  %v1814 = vmul.f32 %v1334, %v1782
  %v1815 = vmul.f32 %v1335, %v1783
  %v1816 = vmul.f32 %v1336, %v1784
  %v1817 = vmul.f32 %v1337, %v1785
  %v1818 = vmul.f32 %v1338, %v1786
  %v1819 = vmul.f32 %v1339, %v1787
  %v1820 = vmul.f32 %v1340, %v1788
  %v1821 = vmul.f32 %v1341, %v1789
  %v1822 = vmul.f32 %v1598, %v1790
  %v1823 = vmul.f32 %v1599, %v1791
  %v1824 = vmul.f32 %v1600, %v1792
  %v1825 = vmul.f32 %v1601, %v1793
  %v1826 = vmul.f32 %v1602, %v1794
  %v1827 = vmul.f32 %v1603, %v1795
  %v1828 = vmul.f32 %v1604, %v1796
  %v1829 = vmul.f32 %v1605, %v1797
  %v1830 = vmul.f32 %v1606, %v1798
  %v1831 = vmul.f32 %v1607, %v1799
  %v1832 = vmul.f32 %v1608, %v1800
  %v1833 = vmul.f32 %v1609, %v1801
  %v1834 = vmul.f32 %v1610, %v1802
  %v1835 = vmul.f32 %v1611, %v1803
  %v1836 = vmul.f32 %v1612, %v1804
  %v1837 = vmul.f32 %v1613, %v1805
  %v1838 = vmul.f32 %v1614, %v1806
  %v1839 = vmul.f32 %v1615, %v1807
  %v1840 = vmul.f32 %v1616, %v1808
  %v1841 = vmul.f32 %v1617, %v1809
  %v1842 = vmul.f32 %v1618, %v1810
  %v1843 = vmul.f32 %v1619, %v1811
  %v1844 = vmul.f32 %v1620, %v1812
  %v1845 = vmul.f32 %v1621, %v1813
  %v1846 = vmul.f32 %v1622, %v1814
  %v1847 = vmul.f32 %v1623, %v1815
  %v1848 = vmul.f32 %v1624, %v1816
  %v1849 = vmul.f32 %v1625, %v1817
  %v1850 = vmul.f32 %v1626, %v1818
  %v1851 = vmul.f32 %v1627, %v1819
  %v1852 = vmul.f32 %v1628, %v1820
  %v1853 = vmul.f32 %v1629, %v1821
  %v1854 = vsub.f32 %v1342, %v1822
  %v1855 = vsub.f32 %v1343, %v1823
  %v1856 = vsub.f32 %v1344, %v1824
  %v1857 = vsub.f32 %v1345, %v1825
  %v1858 = vsub.f32 %v1346, %v1826
  %v1859 = vsub.f32 %v1347, %v1827
  %v1860 = vsub.f32 %v1348, %v1828
  %v1861 = vsub.f32 %v1349, %v1829
  %v1862 = vsub.f32 %v1350, %v1830
  %v1863 = vsub.f32 %v1351, %v1831
  %v1864 = vsub.f32 %v1352, %v1832
  %v1865 = vsub.f32 %v1353, %v1833
  %v1866 = vsub.f32 %v1354, %v1834
  %v1867 = vsub.f32 %v1355, %v1835
  %v1868 = vsub.f32 %v1356, %v1836
  %v1869 = vsub.f32 %v1357, %v1837
  %v1870 = vsub.f32 %v1358, %v1838
  %v1871 = vsub.f32 %v1359, %v1839
  %v1872 = vsub.f32 %v1360, %v1840
  %v1873 = vsub.f32 %v1361, %v1841
  %v1874 = vsub.f32 %v1362, %v1842
  %v1875 = vsub.f32 %v1363, %v1843
  %v1876 = vsub.f32 %v1364, %v1844
  %v1877 = vsub.f32 %v1365, %v1845
  %v1878 = vsub.f32 %v1366, %v1846
  %v1879 = vsub.f32 %v1367, %v1847
  %v1880 = vsub.f32 %v1368, %v1848
  %v1881 = vsub.f32 %v1369, %v1849
  %v1882 = vsub.f32 %v1370, %v1850
  %v1883 = vsub.f32 %v1371, %v1851
  %v1884 = vsub.f32 %v1372, %v1852
  %v1885 = vsub.f32 %v1373, %v1853
  %1887 = vset.pattern.permute.xlu0 0
  %1888 = vperm.xlu0 %1887, %v1790
  %v1889 = vpop.permute.xlu0 %1888
  %1892 = vset.pattern.permute.xlu0 0
  %1893 = vperm.xlu0 %1892, %v1791
  %v1894 = vpop.permute.xlu0 %1893
  %1897 = vset.pattern.permute.xlu0 0
  %1898 = vperm.xlu0 %1897, %v1792
  %v1899 = vpop.permute.xlu0 %1898
  %1902 = vset.pattern.permute.xlu0 0
  %1903 = vperm.xlu0 %1902, %v1793
  %v1904 = vpop.permute.xlu0 %1903
  %1907 = vset.pattern.permute.xlu0 0
  %1908 = vperm.xlu0 %1907, %v1794
  %v1909 = vpop.permute.xlu0 %1908
  %1912 = vset.pattern.permute.xlu0 0
  %1913 = vperm.xlu0 %1912, %v1795
  %v1914 = vpop.permute.xlu0 %1913
  %1917 = vset.pattern.permute.xlu0 0
  %1918 = vperm.xlu0 %1917, %v1796
  %v1919 = vpop.permute.xlu0 %1918
  %1922 = vset.pattern.permute.xlu0 0
  %1923 = vperm.xlu0 %1922, %v1797
  %v1924 = vpop.permute.xlu0 %1923
  %1927 = vset.pattern.permute.xlu0 0
  %1928 = vperm.xlu0 %1927, %v1798
  %v1929 = vpop.permute.xlu0 %1928
  %1932 = vset.pattern.permute.xlu0 0
  %1933 = vperm.xlu0 %1932, %v1799
  %v1934 = vpop.permute.xlu0 %1933
  %1937 = vset.pattern.permute.xlu0 0
  %1938 = vperm.xlu0 %1937, %v1800
  %v1939 = vpop.permute.xlu0 %1938
  %1942 = vset.pattern.permute.xlu0 0
  %1943 = vperm.xlu0 %1942, %v1801
  %v1944 = vpop.permute.xlu0 %1943
  %1947 = vset.pattern.permute.xlu0 0
  %1948 = vperm.xlu0 %1947, %v1802
  %v1949 = vpop.permute.xlu0 %1948
  %1952 = vset.pattern.permute.xlu0 0
  %1953 = vperm.xlu0 %1952, %v1803
  %v1954 = vpop.permute.xlu0 %1953
  %1957 = vset.pattern.permute.xlu0 0
  %1958 = vperm.xlu0 %1957, %v1804
  %v1959 = vpop.permute.xlu0 %1958
  %1962 = vset.pattern.permute.xlu0 0
  %1963 = vperm.xlu0 %1962, %v1805
  %v1964 = vpop.permute.xlu0 %1963
  %1967 = vset.pattern.permute.xlu0 0
  %1968 = vperm.xlu0 %1967, %v1806
  %v1969 = vpop.permute.xlu0 %1968
  %1972 = vset.pattern.permute.xlu0 0
  %1973 = vperm.xlu0 %1972, %v1807
  %v1974 = vpop.permute.xlu0 %1973
  %1977 = vset.pattern.permute.xlu0 0
  %1978 = vperm.xlu0 %1977, %v1808
  %v1979 = vpop.permute.xlu0 %1978
  %1982 = vset.pattern.permute.xlu0 0
  %1983 = vperm.xlu0 %1982, %v1809
  %v1984 = vpop.permute.xlu0 %1983
  %1987 = vset.pattern.permute.xlu0 0
  %1988 = vperm.xlu0 %1987, %v1810
  %v1989 = vpop.permute.xlu0 %1988
  %1992 = vset.pattern.permute.xlu0 0
  %1993 = vperm.xlu0 %1992, %v1811
  %v1994 = vpop.permute.xlu0 %1993
  %1997 = vset.pattern.permute.xlu0 0
  %1998 = vperm.xlu0 %1997, %v1812
  %v1999 = vpop.permute.xlu0 %1998
  %2002 = vset.pattern.permute.xlu0 0
  %2003 = vperm.xlu0 %2002, %v1813
  %v2004 = vpop.permute.xlu0 %2003
  %2007 = vset.pattern.permute.xlu0 0
  %2008 = vperm.xlu0 %2007, %v1814
  %v2009 = vpop.permute.xlu0 %2008
  %2012 = vset.pattern.permute.xlu0 0
  %2013 = vperm.xlu0 %2012, %v1815
  %v2014 = vpop.permute.xlu0 %2013
  %2017 = vset.pattern.permute.xlu0 0
  %2018 = vperm.xlu0 %2017, %v1816
  %v2019 = vpop.permute.xlu0 %2018
  %2022 = vset.pattern.permute.xlu0 0
  %2023 = vperm.xlu0 %2022, %v1817
  %v2024 = vpop.permute.xlu0 %2023
  %2027 = vset.pattern.permute.xlu0 0
  %2028 = vperm.xlu0 %2027, %v1818
  %v2029 = vpop.permute.xlu0 %2028
  %2032 = vset.pattern.permute.xlu0 0
  %2033 = vperm.xlu0 %2032, %v1819
  %v2034 = vpop.permute.xlu0 %2033
  %2037 = vset.pattern.permute.xlu0 0
  %2038 = vperm.xlu0 %2037, %v1820
  %v2039 = vpop.permute.xlu0 %2038
  %2042 = vset.pattern.permute.xlu0 0
  %2043 = vperm.xlu0 %2042, %v1821
  %v2044 = vpop.permute.xlu0 %2043
  %v2046 = vmul.f32 %v1152, %v1889
  %v2047 = vmul.f32 %v1157, %v1894
  %v2048 = vmul.f32 %v1162, %v1899
  %v2049 = vmul.f32 %v1167, %v1904
  %v2050 = vmul.f32 %v1172, %v1909
  %v2051 = vmul.f32 %v1177, %v1914
  %v2052 = vmul.f32 %v1182, %v1919
  %v2053 = vmul.f32 %v1187, %v1924
  %v2054 = vmul.f32 %v1192, %v1929
  %v2055 = vmul.f32 %v1197, %v1934
  %v2056 = vmul.f32 %v1202, %v1939
  %v2057 = vmul.f32 %v1207, %v1944
  %v2058 = vmul.f32 %v1212, %v1949
  %v2059 = vmul.f32 %v1217, %v1954
  %v2060 = vmul.f32 %v1222, %v1959
  %v2061 = vmul.f32 %v1227, %v1964
  %v2062 = vmul.f32 %v1232, %v1969
  %v2063 = vmul.f32 %v1237, %v1974
  %v2064 = vmul.f32 %v1242, %v1979
  %v2065 = vmul.f32 %v1247, %v1984
  %v2066 = vmul.f32 %v1252, %v1989
  %v2067 = vmul.f32 %v1257, %v1994
  %v2068 = vmul.f32 %v1262, %v1999
  %v2069 = vmul.f32 %v1267, %v2004
  %v2070 = vmul.f32 %v1272, %v2009
  %v2071 = vmul.f32 %v1277, %v2014
  %v2072 = vmul.f32 %v1282, %v2019
  %v2073 = vmul.f32 %v1287, %v2024
  %v2074 = vmul.f32 %v1292, %v2029
  %v2075 = vmul.f32 %v1297, %v2034
  %v2076 = vmul.f32 %v1302, %v2039
  %v2077 = vmul.f32 %v1307, %v2044
  %2079 = vset.pattern.permute.xlu0 0
  %2080 = vperm.xlu0 %2079, %v1854
  %v2081 = vpop.permute.xlu0 %2080
  %2084 = vset.pattern.permute.xlu0 0
  %2085 = vperm.xlu0 %2084, %v1855
  %v2086 = vpop.permute.xlu0 %2085
  %2089 = vset.pattern.permute.xlu0 0
  %2090 = vperm.xlu0 %2089, %v1856
  %v2091 = vpop.permute.xlu0 %2090
  %2094 = vset.pattern.permute.xlu0 0
  %2095 = vperm.xlu0 %2094, %v1857
  %v2096 = vpop.permute.xlu0 %2095
  %2099 = vset.pattern.permute.xlu0 0
  %2100 = vperm.xlu0 %2099, %v1858
  %v2101 = vpop.permute.xlu0 %2100
  %2104 = vset.pattern.permute.xlu0 0
  %2105 = vperm.xlu0 %2104, %v1859
  %v2106 = vpop.permute.xlu0 %2105
  %2109 = vset.pattern.permute.xlu0 0
  %2110 = vperm.xlu0 %2109, %v1860
  %v2111 = vpop.permute.xlu0 %2110
  %2114 = vset.pattern.permute.xlu0 0
  %2115 = vperm.xlu0 %2114, %v1861
  %v2116 = vpop.permute.xlu0 %2115
  %2119 = vset.pattern.permute.xlu0 0
  %2120 = vperm.xlu0 %2119, %v1862
  %v2121 = vpop.permute.xlu0 %2120
  %2124 = vset.pattern.permute.xlu0 0
  %2125 = vperm.xlu0 %2124, %v1863
  %v2126 = vpop.permute.xlu0 %2125
  %2129 = vset.pattern.permute.xlu0 0
  %2130 = vperm.xlu0 %2129, %v1864
  %v2131 = vpop.permute.xlu0 %2130
  %2134 = vset.pattern.permute.xlu0 0
  %2135 = vperm.xlu0 %2134, %v1865
  %v2136 = vpop.permute.xlu0 %2135
  %2139 = vset.pattern.permute.xlu0 0
  %2140 = vperm.xlu0 %2139, %v1866
  %v2141 = vpop.permute.xlu0 %2140
  %2144 = vset.pattern.permute.xlu0 0
  %2145 = vperm.xlu0 %2144, %v1867
  %v2146 = vpop.permute.xlu0 %2145
  %2149 = vset.pattern.permute.xlu0 0
  %2150 = vperm.xlu0 %2149, %v1868
  %v2151 = vpop.permute.xlu0 %2150
  %2154 = vset.pattern.permute.xlu0 0
  %2155 = vperm.xlu0 %2154, %v1869
  %v2156 = vpop.permute.xlu0 %2155
  %2159 = vset.pattern.permute.xlu0 0
  %2160 = vperm.xlu0 %2159, %v1870
  %v2161 = vpop.permute.xlu0 %2160
  %2164 = vset.pattern.permute.xlu0 0
  %2165 = vperm.xlu0 %2164, %v1871
  %v2166 = vpop.permute.xlu0 %2165
  %2169 = vset.pattern.permute.xlu0 0
  %2170 = vperm.xlu0 %2169, %v1872
  %v2171 = vpop.permute.xlu0 %2170
  %2174 = vset.pattern.permute.xlu0 0
  %2175 = vperm.xlu0 %2174, %v1873
  %v2176 = vpop.permute.xlu0 %2175
  %2179 = vset.pattern.permute.xlu0 0
  %2180 = vperm.xlu0 %2179, %v1874
  %v2181 = vpop.permute.xlu0 %2180
  %2184 = vset.pattern.permute.xlu0 0
  %2185 = vperm.xlu0 %2184, %v1875
  %v2186 = vpop.permute.xlu0 %2185
  %2189 = vset.pattern.permute.xlu0 0
  %2190 = vperm.xlu0 %2189, %v1876
  %v2191 = vpop.permute.xlu0 %2190
  %2194 = vset.pattern.permute.xlu0 0
  %2195 = vperm.xlu0 %2194, %v1877
  %v2196 = vpop.permute.xlu0 %2195
  %2199 = vset.pattern.permute.xlu0 0
  %2200 = vperm.xlu0 %2199, %v1878
  %v2201 = vpop.permute.xlu0 %2200
  %2204 = vset.pattern.permute.xlu0 0
  %2205 = vperm.xlu0 %2204, %v1879
  %v2206 = vpop.permute.xlu0 %2205
  %2209 = vset.pattern.permute.xlu0 0
  %2210 = vperm.xlu0 %2209, %v1880
  %v2211 = vpop.permute.xlu0 %2210
  %2214 = vset.pattern.permute.xlu0 0
  %2215 = vperm.xlu0 %2214, %v1881
  %v2216 = vpop.permute.xlu0 %2215
  %2219 = vset.pattern.permute.xlu0 0
  %2220 = vperm.xlu0 %2219, %v1882
  %v2221 = vpop.permute.xlu0 %2220
  %2224 = vset.pattern.permute.xlu0 0
  %2225 = vperm.xlu0 %2224, %v1883
  %v2226 = vpop.permute.xlu0 %2225
  %2229 = vset.pattern.permute.xlu0 0
  %2230 = vperm.xlu0 %2229, %v1884
  %v2231 = vpop.permute.xlu0 %2230
  %2234 = vset.pattern.permute.xlu0 0
  %2235 = vperm.xlu0 %2234, %v1885
  %v2236 = vpop.permute.xlu0 %2235
  %v2238 = vadd.f32 %v2046, %v2081
  %v2239 = vadd.f32 %v2047, %v2086
  %v2240 = vadd.f32 %v2048, %v2091
  %v2241 = vadd.f32 %v2049, %v2096
  %v2242 = vadd.f32 %v2050, %v2101
  %v2243 = vadd.f32 %v2051, %v2106
  %v2244 = vadd.f32 %v2052, %v2111
  %v2245 = vadd.f32 %v2053, %v2116
  %v2246 = vadd.f32 %v2054, %v2121
  %v2247 = vadd.f32 %v2055, %v2126
  %v2248 = vadd.f32 %v2056, %v2131
  %v2249 = vadd.f32 %v2057, %v2136
  %v2250 = vadd.f32 %v2058, %v2141
  %v2251 = vadd.f32 %v2059, %v2146
  %v2252 = vadd.f32 %v2060, %v2151
  %v2253 = vadd.f32 %v2061, %v2156
  %v2254 = vadd.f32 %v2062, %v2161
  %v2255 = vadd.f32 %v2063, %v2166
  %v2256 = vadd.f32 %v2064, %v2171
  %v2257 = vadd.f32 %v2065, %v2176
  %v2258 = vadd.f32 %v2066, %v2181
  %v2259 = vadd.f32 %v2067, %v2186
  %v2260 = vadd.f32 %v2068, %v2191
  %v2261 = vadd.f32 %v2069, %v2196
  %v2262 = vadd.f32 %v2070, %v2201
  %v2263 = vadd.f32 %v2071, %v2206
  %v2264 = vadd.f32 %v2072, %v2211
  %v2265 = vadd.f32 %v2073, %v2216
  %v2266 = vadd.f32 %v2074, %v2221
  %v2267 = vadd.f32 %v2075, %v2226
  %v2268 = vadd.f32 %v2076, %v2231
  %v2269 = vadd.f32 %v2077, %v2236
  %v2270 = vmax.f32 %v2238, 0.0
  %v2271 = vmax.f32 %v2239, 0.0
  %v2272 = vmax.f32 %v2240, 0.0
  %v2273 = vmax.f32 %v2241, 0.0
  %v2274 = vmax.f32 %v2242, 0.0
  %v2275 = vmax.f32 %v2243, 0.0
  %v2276 = vmax.f32 %v2244, 0.0
  %v2277 = vmax.f32 %v2245, 0.0
  %v2278 = vmax.f32 %v2246, 0.0
  %v2279 = vmax.f32 %v2247, 0.0
  %v2280 = vmax.f32 %v2248, 0.0
  %v2281 = vmax.f32 %v2249, 0.0
  %v2282 = vmax.f32 %v2250, 0.0
  %v2283 = vmax.f32 %v2251, 0.0
  %v2284 = vmax.f32 %v2252, 0.0
  %v2285 = vmax.f32 %v2253, 0.0
  %v2286 = vmax.f32 %v2254, 0.0
  %v2287 = vmax.f32 %v2255, 0.0
  %v2288 = vmax.f32 %v2256, 0.0
  %v2289 = vmax.f32 %v2257, 0.0
  %v2290 = vmax.f32 %v2258, 0.0
  %v2291 = vmax.f32 %v2259, 0.0
  %v2292 = vmax.f32 %v2260, 0.0
  %v2293 = vmax.f32 %v2261, 0.0
  %v2294 = vmax.f32 %v2262, 0.0
  %v2295 = vmax.f32 %v2263, 0.0
  %v2296 = vmax.f32 %v2264, 0.0
  %v2297 = vmax.f32 %v2265, 0.0
  %v2298 = vmax.f32 %v2266, 0.0
  %v2299 = vmax.f32 %v2267, 0.0
  %v2300 = vmax.f32 %v2268, 0.0
  %v2301 = vmax.f32 %v2269, 0.0
  %vm2302 = vcmask 130048
  %2303 = vst.msk [vmem:[%s10] sm:$0xff] %vm2302, %v2270
  %2304 = vst.msk [vmem:[%s10 + $0x8] sm:$0xff] %vm2302, %v2271
  %2305 = vst.msk [vmem:[%s10 + $0x10] sm:$0xff] %vm2302, %v2272
  %2306 = vst.msk [vmem:[%s10 + $0x18] sm:$0xff] %vm2302, %v2273
  %2307 = vst.msk [vmem:[%s10 + $0x20] sm:$0xff] %vm2302, %v2274
  %2308 = vst.msk [vmem:[%s10 + $0x28] sm:$0xff] %vm2302, %v2275
  %2309 = vst.msk [vmem:[%s10 + $0x30] sm:$0xff] %vm2302, %v2276
  %2310 = vst.msk [vmem:[%s10 + $0x38] sm:$0xff] %vm2302, %v2277
  %2311 = vst.msk [vmem:[%s10 + $0x40] sm:$0xff] %vm2302, %v2278
  %2312 = vst.msk [vmem:[%s10 + $0x48] sm:$0xff] %vm2302, %v2279
  %2313 = vst.msk [vmem:[%s10 + $0x50] sm:$0xff] %vm2302, %v2280
  %2314 = vst.msk [vmem:[%s10 + $0x58] sm:$0xff] %vm2302, %v2281
  %2315 = vst.msk [vmem:[%s10 + $0x60] sm:$0xff] %vm2302, %v2282
  %2316 = vst.msk [vmem:[%s10 + $0x68] sm:$0xff] %vm2302, %v2283
  %2317 = vst.msk [vmem:[%s10 + $0x70] sm:$0xff] %vm2302, %v2284
  %2318 = vst.msk [vmem:[%s10 + $0x78] sm:$0xff] %vm2302, %v2285
  %2319 = vst.msk [vmem:[%s10 + $0x80] sm:$0xff] %vm2302, %v2286
  %2320 = vst.msk [vmem:[%s10 + $0x88] sm:$0xff] %vm2302, %v2287
  %2321 = vst.msk [vmem:[%s10 + $0x90] sm:$0xff] %vm2302, %v2288
  %2322 = vst.msk [vmem:[%s10 + $0x98] sm:$0xff] %vm2302, %v2289
  %2323 = vst.msk [vmem:[%s10 + $0xa0] sm:$0xff] %vm2302, %v2290
  %2324 = vst.msk [vmem:[%s10 + $0xa8] sm:$0xff] %vm2302, %v2291
  %2325 = vst.msk [vmem:[%s10 + $0xb0] sm:$0xff] %vm2302, %v2292
  %2326 = vst.msk [vmem:[%s10 + $0xb8] sm:$0xff] %vm2302, %v2293
  %2327 = vst.msk [vmem:[%s10 + $0xc0] sm:$0xff] %vm2302, %v2294
  %2328 = vst.msk [vmem:[%s10 + $0xc8] sm:$0xff] %vm2302, %v2295
  %2329 = vst.msk [vmem:[%s10 + $0xd0] sm:$0xff] %vm2302, %v2296
  %2330 = vst.msk [vmem:[%s10 + $0xd8] sm:$0xff] %vm2302, %v2297
  %2331 = vst.msk [vmem:[%s10 + $0xe0] sm:$0xff] %vm2302, %v2298
  %2332 = vst.msk [vmem:[%s10 + $0xe8] sm:$0xff] %vm2302, %v2299
  %2333 = vst.msk [vmem:[%s10 + $0xf0] sm:$0xff] %vm2302, %v2300
  %2334 = vst.msk [vmem:[%s10 + $0xf8] sm:$0xff] %vm2302, %v2301
  %2367 = vrot.lane.b32.xlu0 %v2270, 112
  %v2368 = vpop.permute.xlu0 %2367
  %2369 = vrot.lane.b32.xlu0 %v2271, 112
  %v2370 = vpop.permute.xlu0 %2369
  %2371 = vrot.lane.b32.xlu0 %v2272, 112
  %v2372 = vpop.permute.xlu0 %2371
  %2373 = vrot.lane.b32.xlu0 %v2273, 112
  %v2374 = vpop.permute.xlu0 %2373
  %2375 = vrot.lane.b32.xlu0 %v2274, 112
  %v2376 = vpop.permute.xlu0 %2375
  %2377 = vrot.lane.b32.xlu0 %v2275, 112
  %v2378 = vpop.permute.xlu0 %2377
  %2379 = vrot.lane.b32.xlu0 %v2276, 112
  %v2380 = vpop.permute.xlu0 %2379
  %2381 = vrot.lane.b32.xlu0 %v2277, 112
  %v2382 = vpop.permute.xlu0 %2381
  %2383 = vrot.lane.b32.xlu0 %v2278, 112
  %v2384 = vpop.permute.xlu0 %2383
  %2385 = vrot.lane.b32.xlu0 %v2279, 112
  %v2386 = vpop.permute.xlu0 %2385
  %2387 = vrot.lane.b32.xlu0 %v2280, 112
  %v2388 = vpop.permute.xlu0 %2387
  %2389 = vrot.lane.b32.xlu0 %v2281, 112
  %v2390 = vpop.permute.xlu0 %2389
  %2391 = vrot.lane.b32.xlu0 %v2282, 112
  %v2392 = vpop.permute.xlu0 %2391
  %2393 = vrot.lane.b32.xlu0 %v2283, 112
  %v2394 = vpop.permute.xlu0 %2393
  %2395 = vrot.lane.b32.xlu0 %v2284, 112
  %v2396 = vpop.permute.xlu0 %2395
  %2397 = vrot.lane.b32.xlu0 %v2285, 112
  %v2398 = vpop.permute.xlu0 %2397
  %2399 = vrot.lane.b32.xlu0 %v2286, 112
  %v2400 = vpop.permute.xlu0 %2399
  %2401 = vrot.lane.b32.xlu0 %v2287, 112
  %v2402 = vpop.permute.xlu0 %2401
  %2403 = vrot.lane.b32.xlu0 %v2288, 112
  %v2404 = vpop.permute.xlu0 %2403
  %2405 = vrot.lane.b32.xlu0 %v2289, 112
  %v2406 = vpop.permute.xlu0 %2405
  %2407 = vrot.lane.b32.xlu0 %v2290, 112
  %v2408 = vpop.permute.xlu0 %2407
  %2409 = vrot.lane.b32.xlu0 %v2291, 112
  %v2410 = vpop.permute.xlu0 %2409
  %2411 = vrot.lane.b32.xlu0 %v2292, 112
  %v2412 = vpop.permute.xlu0 %2411
  %2413 = vrot.lane.b32.xlu0 %v2293, 112
  %v2414 = vpop.permute.xlu0 %2413
  %2415 = vrot.lane.b32.xlu0 %v2294, 112
  %v2416 = vpop.permute.xlu0 %2415
  %2417 = vrot.lane.b32.xlu0 %v2295, 112
  %v2418 = vpop.permute.xlu0 %2417
  %2419 = vrot.lane.b32.xlu0 %v2296, 112
  %v2420 = vpop.permute.xlu0 %2419
  %2421 = vrot.lane.b32.xlu0 %v2297, 112
  %v2422 = vpop.permute.xlu0 %2421
  %2423 = vrot.lane.b32.xlu0 %v2298, 112
  %v2424 = vpop.permute.xlu0 %2423
  %2425 = vrot.lane.b32.xlu0 %v2299, 112
  %v2426 = vpop.permute.xlu0 %2425
  %2427 = vrot.lane.b32.xlu0 %v2300, 112
  %v2428 = vpop.permute.xlu0 %2427
  %2429 = vrot.lane.b32.xlu0 %v2301, 112
  %v2430 = vpop.permute.xlu0 %2429
  %s2463 = scalar_lea.vmem %s10, 256
  %2464 = vst.msk [vmem:[%s2463] sm:$0xff] %vm2302, %v2368
  %2465 = vst.msk [vmem:[%s2463 + $0x8] sm:$0xff] %vm2302, %v2370
  %2466 = vst.msk [vmem:[%s2463 + $0x10] sm:$0xff] %vm2302, %v2372
  %2467 = vst.msk [vmem:[%s2463 + $0x18] sm:$0xff] %vm2302, %v2374
  %2468 = vst.msk [vmem:[%s2463 + $0x20] sm:$0xff] %vm2302, %v2376
  %2469 = vst.msk [vmem:[%s2463 + $0x28] sm:$0xff] %vm2302, %v2378
  %2470 = vst.msk [vmem:[%s2463 + $0x30] sm:$0xff] %vm2302, %v2380
  %2471 = vst.msk [vmem:[%s2463 + $0x38] sm:$0xff] %vm2302, %v2382
  %2472 = vst.msk [vmem:[%s2463 + $0x40] sm:$0xff] %vm2302, %v2384
  %2473 = vst.msk [vmem:[%s2463 + $0x48] sm:$0xff] %vm2302, %v2386
  %2474 = vst.msk [vmem:[%s2463 + $0x50] sm:$0xff] %vm2302, %v2388
  %2475 = vst.msk [vmem:[%s2463 + $0x58] sm:$0xff] %vm2302, %v2390
  %2476 = vst.msk [vmem:[%s2463 + $0x60] sm:$0xff] %vm2302, %v2392
  %2477 = vst.msk [vmem:[%s2463 + $0x68] sm:$0xff] %vm2302, %v2394
  %2478 = vst.msk [vmem:[%s2463 + $0x70] sm:$0xff] %vm2302, %v2396
  %2479 = vst.msk [vmem:[%s2463 + $0x78] sm:$0xff] %vm2302, %v2398
  %2480 = vst.msk [vmem:[%s2463 + $0x80] sm:$0xff] %vm2302, %v2400
  %2481 = vst.msk [vmem:[%s2463 + $0x88] sm:$0xff] %vm2302, %v2402
  %2482 = vst.msk [vmem:[%s2463 + $0x90] sm:$0xff] %vm2302, %v2404
  %2483 = vst.msk [vmem:[%s2463 + $0x98] sm:$0xff] %vm2302, %v2406
  %2484 = vst.msk [vmem:[%s2463 + $0xa0] sm:$0xff] %vm2302, %v2408
  %2485 = vst.msk [vmem:[%s2463 + $0xa8] sm:$0xff] %vm2302, %v2410
  %2486 = vst.msk [vmem:[%s2463 + $0xb0] sm:$0xff] %vm2302, %v2412
  %2487 = vst.msk [vmem:[%s2463 + $0xb8] sm:$0xff] %vm2302, %v2414
  %2488 = vst.msk [vmem:[%s2463 + $0xc0] sm:$0xff] %vm2302, %v2416
  %2489 = vst.msk [vmem:[%s2463 + $0xc8] sm:$0xff] %vm2302, %v2418
  %2490 = vst.msk [vmem:[%s2463 + $0xd0] sm:$0xff] %vm2302, %v2420
  %2491 = vst.msk [vmem:[%s2463 + $0xd8] sm:$0xff] %vm2302, %v2422
  %2492 = vst.msk [vmem:[%s2463 + $0xe0] sm:$0xff] %vm2302, %v2424
  %2493 = vst.msk [vmem:[%s2463 + $0xe8] sm:$0xff] %vm2302, %v2426
  %2494 = vst.msk [vmem:[%s2463 + $0xf0] sm:$0xff] %vm2302, %v2428
  %2495 = vst.msk [vmem:[%s2463 + $0xf8] sm:$0xff] %vm2302, %v2430
  // Predicated region
  $region42: #{tpu_custom_call.1} parent=0 // pred_check
    _
  $region43: #{tpu_custom_call.1} parent=0 // pred_check_branch
    %2497 = sbr.rel (0) target = $region45
  $region44: #{tpu_custom_call.1} parent=0 // pred_region
    _
  $region45: #{tpu_custom_call.1} parent=0 // pred_fallthru
    _
  // Predicated region
  $region46: #{tpu_custom_call.1} parent=0 // pred_check
    _
  $region47: #{tpu_custom_call.1} parent=0 // pred_check_branch
    %2499 = sbr.rel (0) target = $region49
  $region48: #{tpu_custom_call.1} parent=0 // pred_region
    _
  $region49: #{tpu_custom_call.1} parent=0 // pred_fallthru
    _

</llo_original>
